<compile_context>
chip_gen: v7x
topology: tpu7x:2x2x1
jax: 0.10.0
libtpu: 0.0.40
codegen_flags: <defaults>
</compile_context>

<pallas_src>
import jax
import jax.numpy as jnp
from jax.experimental import pallas as pl
from jax.experimental.pallas import tpu as pltpu

# Both the kernel and the pure-JAX reference go through MXU/XLA matmuls; pin
# f32 matmul precision so their rounding paths match.
jax.config.update("jax_default_matmul_precision", "highest")


def attention_kernel(dec_ref, enc_ref, lens_ref, wa_ref, wc_ref, out_ref, attn_ref):
    dec = dec_ref[...]                                # (TB, Din)      f32
    enc = enc_ref[...]                                # (TB, S, Dout)  f32
    lens = lens_ref[...]                              # (TB, 1)        int32
    wa = wa_ref[...]                                  # (Din, Dout)    f32
    Dout = enc.shape[-1]

    # x = Wa(decoder_hidden): plain 2-D MXU matmul.
    x = jnp.dot(dec, wa, preferred_element_type=jnp.float32)            # (TB, Dout)

    # attn_scores[b, s] = <enc[b, s, :], x[b, :]>.
    # VPU broadcast-multiply + lane reduce: q=1 batched MXU matmuls would use
    # <=1/256 of the MXU and serialize through the result FIFO.
    scores = jnp.sum(enc * x[:, None, :], axis=-1)                       # (TB, S)

    # get_mask(source_lens): position < length; then the PyTorch quirk that any
    # exact zero (masked OR genuinely zero score) is set to -1e10.
    pos = jax.lax.broadcasted_iota(jnp.int32, scores.shape, 1)           # (TB, S)
    mask = (pos < lens).astype(jnp.float32)
    masked = mask * scores
    masked = jnp.where(masked == 0.0, jnp.float32(-1.0e10), masked)

    # softmax over the sequence (lane) axis; exact normalization so the
    # returned attention rows sum to 1.
    m = jnp.max(masked, axis=-1, keepdims=True)
    e = jnp.exp(masked - m)
    attn = e / jnp.sum(e, axis=-1, keepdims=True)                        # (TB, S)

    # context[b, d] = sum_s attn[b, s] * enc[b, s, d]: VPU mul + sublane reduce.
    ctx = jnp.sum(attn[:, :, None] * enc, axis=1)                        # (TB, Dout)

    # tanh(Wc(cat(ctx, dec))) == tanh(ctx @ Wc[:Dout] + dec @ Wc[Dout:]).
    wc_ctx = wc_ref[:Dout, :]                                            # (Dout, Dout)
    wc_dec = wc_ref[Dout:, :]                                            # (Din,  Dout)
    out = jnp.tanh(
        jnp.dot(ctx, wc_ctx, preferred_element_type=jnp.float32)
        + jnp.dot(dec, wc_dec, preferred_element_type=jnp.float32))

    out_ref[...] = out.astype(out_ref.dtype)
    attn_ref[...] = attn.astype(attn_ref.dtype)


def _pick_block_b(B, S, Dout, vmem_budget_bytes=24 << 20):
    """Large batch tile for the HBM-bound enc stream, capped by a VMEM budget,
    with >=2 grid steps when B allows it (v7x has 2 TensorCores)."""
    b8 = 8 * ((B + 7) // 8)
    if b8 < 16:
        return b8
    block_b = min(256, 8 * (((b8 + 1) // 2 + 7) // 8))
    # double-buffered enc block must fit the budget
    while block_b > 8 and 2 * block_b * S * Dout * 4 > vmem_budget_bytes:
        block_b //= 2
    return max(8, 8 * (block_b // 8))


def attention_forward(decoder_hidden, encoder_outputs, source_lens, wa, wc, *, block_b=None):
    """decoder_hidden: (B, Din) f32
       encoder_outputs: (B, S, Dout) f32
       source_lens: (B,) int32 (max(source_lens) must equal S, as in PyTorch)
       wa: (Din, Dout) f32          -- Wa.weight.T
       wc: (Dout + Din, Dout) f32   -- Wc.weight.T
       returns (x, attn_scores) with shapes (B, Dout) and (S, B)."""
    B, Din = decoder_hidden.shape
    _, S, Dout = encoder_outputs.shape
    assert wa.shape == (Din, Dout)
    assert wc.shape == (Dout + Din, Dout)

    if block_b is None:
        block_b = _pick_block_b(B, S, Dout)
    else:
        block_b = max(8, 8 * ((block_b + 7) // 8))

    lens = source_lens.reshape(B, 1).astype(jnp.int32)

    # Pad the batch up to a multiple of the batch tile; padded rows are finite
    # (lens=1) and sliced away below.
    Bp = block_b * ((B + block_b - 1) // block_b)
    if Bp != B:
        pad = Bp - B
        decoder_hidden = jnp.pad(decoder_hidden, ((0, pad), (0, 0)))
        encoder_outputs = jnp.pad(encoder_outputs, ((0, pad), (0, 0), (0, 0)))
        lens = jnp.pad(lens, ((0, pad), (0, 0)), constant_values=1)

    grid = (Bp // block_b,)
    out, attn = pl.pallas_call(
        attention_kernel,
        out_shape=(
            jax.ShapeDtypeStruct((Bp, Dout), jnp.float32),
            jax.ShapeDtypeStruct((Bp, S), jnp.float32),
        ),
        grid=grid,
        in_specs=[
            pl.BlockSpec((block_b, Din), lambda b: (b, 0)),
            pl.BlockSpec((block_b, S, Dout), lambda b: (b, 0, 0)),
            pl.BlockSpec((block_b, 1), lambda b: (b, 0)),
            pl.BlockSpec((Din, Dout), lambda b: (0, 0)),
            pl.BlockSpec((Dout + Din, Dout), lambda b: (0, 0)),
        ],
        out_specs=(
            pl.BlockSpec((block_b, Dout), lambda b: (b, 0)),
            pl.BlockSpec((block_b, S), lambda b: (b, 0)),
        ),
        compiler_params=pltpu.CompilerParams(
            dimension_semantics=("parallel",),
            vmem_limit_bytes=64 * 1024 * 1024),
    )(decoder_hidden, encoder_outputs, lens, wa, wc)

    # PyTorch returns attention as (S, B); keep the transpose in the wrapper so
    # the in-kernel attn store stays S-last (lane-dense) and unpadded.
    return out[:B], attn[:B, :].T


def _reference(decoder_hidden, encoder_outputs, source_lens, wa, wc):
    # Pure-JAX mirror of the PyTorch forward, for a correctness check.
    x = decoder_hidden @ wa                                       # (B, Dout)
    enc_t = jnp.transpose(encoder_outputs, (1, 0, 2))             # (S, B, Dout)
    scores = jnp.sum(enc_t * x[None, :, :], axis=2)               # (S, B)
    S = enc_t.shape[0]
    mask = (jnp.arange(S)[:, None] < source_lens[None, :]).astype(jnp.float32)
    masked = mask * scores
    masked = jnp.where(masked == 0.0, -1.0e10, masked)
    attn = jax.nn.softmax(masked, axis=0)                         # (S, B)
    ctx = jnp.sum(attn[:, :, None] * enc_t, axis=0)               # (B, Dout)
    out = jnp.tanh(jnp.concatenate([ctx, decoder_hidden], axis=1) @ wc)
    return out, attn


if __name__ == "__main__":
    B, S = 16, 8
    input_dim = 32    # decoder hidden dim
    output_dim = 32   # encoder output dim (same as input dim per module docstring)

    key = jax.random.PRNGKey(0)
    k_dec, k_enc, k_len, k_wa, k_wc = jax.random.split(key, 5)

    decoder_hidden = jax.random.normal(k_dec, (B, input_dim), dtype=jnp.float32)
    encoder_outputs = jax.random.normal(k_enc, (B, S, output_dim), dtype=jnp.float32)
    source_lens = jax.random.randint(k_len, (B,), 1, S + 1).astype(jnp.int32)
    source_lens = source_lens.at[0].set(S)   # max(source_lens) == S, as PyTorch assumes

    # Deterministic parameter init (stored as W.T relative to nn.Linear.weight)
    wa = (jax.random.normal(k_wa, (input_dim, output_dim), dtype=jnp.float32)
          * (1.0 / jnp.sqrt(input_dim)))
    wc = (jax.random.normal(k_wc, (output_dim + input_dim, output_dim), dtype=jnp.float32)
          * (1.0 / jnp.sqrt(output_dim + input_dim)))

    out, attn = attention_forward(decoder_hidden, encoder_outputs, source_lens, wa, wc)
    out = jax.block_until_ready(out)
    attn = jax.block_until_ready(attn)

    ref_out, ref_attn = _reference(decoder_hidden, encoder_outputs, source_lens, wa, wc)
    assert out.shape == (B, output_dim) and attn.shape == (S, B)
    assert jnp.allclose(out, ref_out, atol=1e-3, rtol=1e-3), \
        float(jnp.max(jnp.abs(out - ref_out)))
    assert jnp.allclose(attn, ref_attn, atol=1e-3, rtol=1e-3), \
        float(jnp.max(jnp.abs(attn - ref_attn)))

    print("KERNEL_OK")
</pallas_src>

<mosaic_0001>
module attributes {stable_mosaic.version = 11 : i64} {
  func.func @attention_kernel(%arg0: i32, %arg1: memref<8x32xf32, #tpu.memory_space<vmem>>, %arg2: memref<8x8x32xf32, #tpu.memory_space<vmem>>, %arg3: memref<8x1xi32, #tpu.memory_space<vmem>>, %arg4: memref<32x32xf32, #tpu.memory_space<vmem>>, %arg5: memref<64x32xf32, #tpu.memory_space<vmem>>, %arg6: memref<8x32xf32, #tpu.memory_space<vmem>>, %arg7: memref<8x8xf32, #tpu.memory_space<vmem>>) attributes {dimension_semantics = [#tpu.dimension_semantics<parallel>], iteration_bounds = array<i64: 2>, scalar_prefetch = 0 : i64, scratch_operands = 0 : i64, tpu.core_type = #tpu.core_type<tc>, window_params = [{transform_indices = @transform_0, window_bounds = array<i64: 8, 32>}, {transform_indices = @transform_1, window_bounds = array<i64: 8, 8, 32>}, {transform_indices = @transform_2, window_bounds = array<i64: 8, 1>}, {pipeline_mode = #tpu.pipeline_mode<synchronous>, transform_indices = @transform_3, window_bounds = array<i64: 32, 32>}, {pipeline_mode = #tpu.pipeline_mode<synchronous>, transform_indices = @transform_4, window_bounds = array<i64: 64, 32>}, {transform_indices = @transform_5, window_bounds = array<i64: 8, 32>}, {transform_indices = @transform_6, window_bounds = array<i64: 8, 8>}]} {
    %c0 = arith.constant 0 : index
    %c0_0 = arith.constant 0 : index
    %0 = vector.load %arg1[%c0, %c0_0] : memref<8x32xf32, #tpu.memory_space<vmem>>, vector<8x32xf32>
    %c0_1 = arith.constant 0 : index
    %c0_2 = arith.constant 0 : index
    %c0_3 = arith.constant 0 : index
    %1 = vector.load %arg2[%c0_1, %c0_2, %c0_3] : memref<8x8x32xf32, #tpu.memory_space<vmem>>, vector<8x8x32xf32>
    %c0_4 = arith.constant 0 : index
    %c0_5 = arith.constant 0 : index
    %2 = vector.load %arg3[%c0_4, %c0_5] : memref<8x1xi32, #tpu.memory_space<vmem>>, vector<8x1xi32>
    %c0_6 = arith.constant 0 : index
    %c0_7 = arith.constant 0 : index
    %3 = vector.load %arg4[%c0_6, %c0_7] : memref<32x32xf32, #tpu.memory_space<vmem>>, vector<32x32xf32>
    %cst = arith.constant dense<0.000000e+00> : vector<8x32xf32>
    %4 = tpu.matmul %0, %3, %cst {dimension_numbers = #tpu.dot_dimension_numbers<[1], [0], [0], [1], [0, 0, 1, 1], [], []>, precision = #tpu.contract_precision<fp32>} : vector<8x32xf32>, vector<32x32xf32>, vector<8x32xf32> -> vector<8x32xf32>
    %5 = vector.shape_cast %4 : vector<8x32xf32> to vector<8x1x32xf32>
    %6 = vector.broadcast %5 : vector<8x1x32xf32> to vector<8x8x32xf32>
    %7 = arith.mulf %1, %6 : vector<8x8x32xf32>
    %cst_8 = arith.constant dense<0.000000e+00> : vector<8x8xf32>
    %8 = vector.multi_reduction <add>, %7, %cst_8 [2] : vector<8x8x32xf32> to vector<8x8xf32>
    %9 = tpu.iota {dimensions = array<i32: 1>} : vector<8x8xi32>
    %10 = vector.broadcast %2 : vector<8x1xi32> to vector<8x8xi32>
    %11 = arith.cmpi slt, %9, %10 : vector<8x8xi32>
    %12 = arith.extui %11 : vector<8x8xi1> to vector<8x8xi32>
    %13 = arith.sitofp %12 : vector<8x8xi32> to vector<8x8xf32>
    %14 = arith.mulf %13, %8 : vector<8x8xf32>
    %cst_9 = arith.constant 0.000000e+00 : f32
    %15 = vector.broadcast %cst_9 : f32 to vector<8x8xf32>
    %16 = arith.cmpf oeq, %14, %15 : vector<8x8xf32>
    %cst_10 = arith.constant -1.000000e+10 : f32
    %17 = vector.broadcast %cst_10 : f32 to vector<8x8xf32>
    %18 = arith.select %16, %17, %14 : vector<8x8xi1>, vector<8x8xf32>
    %cst_11 = arith.constant dense<0xFF800000> : vector<8xf32>
    %19 = vector.multi_reduction <maximumf>, %18, %cst_11 [1] : vector<8x8xf32> to vector<8xf32>
    %20 = vector.shape_cast %19 : vector<8xf32> to vector<8x1xf32>
    %21 = vector.broadcast %20 : vector<8x1xf32> to vector<8x8xf32>
    %22 = arith.subf %18, %21 : vector<8x8xf32>
    %23 = math.exp %22 : vector<8x8xf32>
    %cst_12 = arith.constant dense<0.000000e+00> : vector<8xf32>
    %24 = vector.multi_reduction <add>, %23, %cst_12 [1] : vector<8x8xf32> to vector<8xf32>
    %25 = vector.shape_cast %24 : vector<8xf32> to vector<8x1xf32>
    %26 = vector.broadcast %25 : vector<8x1xf32> to vector<8x8xf32>
    %27 = arith.divf %23, %26 : vector<8x8xf32>
    %28 = vector.shape_cast %27 : vector<8x8xf32> to vector<8x8x1xf32>
    %29 = vector.broadcast %28 : vector<8x8x1xf32> to vector<8x8x32xf32>
    %30 = arith.mulf %29, %1 : vector<8x8x32xf32>
    %cst_13 = arith.constant dense<0.000000e+00> : vector<8x32xf32>
    %31 = vector.multi_reduction <add>, %30, %cst_13 [1] : vector<8x8x32xf32> to vector<8x32xf32>
    %c0_14 = arith.constant 0 : index
    %c0_15 = arith.constant 0 : index
    %32 = vector.load %arg5[%c0_14, %c0_15] : memref<64x32xf32, #tpu.memory_space<vmem>>, vector<32x32xf32>
    %c32 = arith.constant 32 : index
    %c0_16 = arith.constant 0 : index
    %33 = vector.load %arg5[%c32, %c0_16] : memref<64x32xf32, #tpu.memory_space<vmem>>, vector<32x32xf32>
    %cst_17 = arith.constant dense<0.000000e+00> : vector<8x32xf32>
    %34 = tpu.matmul %31, %32, %cst_17 {dimension_numbers = #tpu.dot_dimension_numbers<[1], [0], [0], [1], [0, 0, 1, 1], [], []>, precision = #tpu.contract_precision<fp32>} : vector<8x32xf32>, vector<32x32xf32>, vector<8x32xf32> -> vector<8x32xf32>
    %cst_18 = arith.constant dense<0.000000e+00> : vector<8x32xf32>
    %35 = tpu.matmul %0, %33, %cst_18 {dimension_numbers = #tpu.dot_dimension_numbers<[1], [0], [0], [1], [0, 0, 1, 1], [], []>, precision = #tpu.contract_precision<fp32>} : vector<8x32xf32>, vector<32x32xf32>, vector<8x32xf32> -> vector<8x32xf32>
    %36 = arith.addf %34, %35 : vector<8x32xf32>
    %37 = math.tanh %36 : vector<8x32xf32>
    %c0_19 = arith.constant 0 : index
    %c0_20 = arith.constant 0 : index
    %38 = vector.load %arg6[%c0_19, %c0_20] : memref<8x32xf32, #tpu.memory_space<vmem>>, vector<8x32xf32>
    tpu.vector_store %arg6[%c0_19, %c0_20], %37 {strides = array<i32>} : memref<8x32xf32, #tpu.memory_space<vmem>>, vector<8x32xf32>,
    %c0_21 = arith.constant 0 : index
    %c0_22 = arith.constant 0 : index
    %39 = vector.load %arg7[%c0_21, %c0_22] : memref<8x8xf32, #tpu.memory_space<vmem>>, vector<8x8xf32>
    tpu.vector_store %arg7[%c0_21, %c0_22], %27 {strides = array<i32>} : memref<8x8xf32, #tpu.memory_space<vmem>>, vector<8x8xf32>,
    return
  }
  func.func @transform_0(%arg0: i32) -> (i32, i32) {
    %c0_i32 = arith.constant 0 : i32
    %c0_i32_0 = arith.constant 0 : i32
    return %arg0, %c0_i32 : i32, i32
  }
  func.func @transform_1(%arg0: i32) -> (i32, i32, i32) {
    %c0_i32 = arith.constant 0 : i32
    %c0_i32_0 = arith.constant 0 : i32
    %c0_i32_1 = arith.constant 0 : i32
    return %arg0, %c0_i32, %c0_i32_0 : i32, i32, i32
  }
  func.func @transform_2(%arg0: i32) -> (i32, i32) {
    %c0_i32 = arith.constant 0 : i32
    %c0_i32_0 = arith.constant 0 : i32
    return %arg0, %c0_i32 : i32, i32
  }
  func.func @transform_3(%arg0: i32) -> (i32, i32) {
    %c0_i32 = arith.constant 0 : i32
    %c0_i32_0 = arith.constant 0 : i32
    %c0_i32_1 = arith.constant 0 : i32
    return %c0_i32, %c0_i32_0 : i32, i32
  }
  func.func @transform_4(%arg0: i32) -> (i32, i32) {
    %c0_i32 = arith.constant 0 : i32
    %c0_i32_0 = arith.constant 0 : i32
    %c0_i32_1 = arith.constant 0 : i32
    return %c0_i32, %c0_i32_0 : i32, i32
  }
  func.func @transform_5(%arg0: i32) -> (i32, i32) {
    %c0_i32 = arith.constant 0 : i32
    %c0_i32_0 = arith.constant 0 : i32
    return %arg0, %c0_i32 : i32, i32
  }
  func.func @transform_6(%arg0: i32) -> (i32, i32) {
    %c0_i32 = arith.constant 0 : i32
    %c0_i32_0 = arith.constant 0 : i32
    return %arg0, %c0_i32 : i32, i32
  }
}

</mosaic_0001>

<llo_original>
// kernel: tpu_custom_call.1
$region0: #{tpu_custom_call.1}
  #allocation0 [shape = 'u32[]', space=smem, size = 0x4, offset = 0x4, fixed_abs, tag = 'smem constant byte address 0x4 - core index']
  #allocation1 [shape = 'u32[144,128]{1,0:T(1,128)}', space=vmem, size = 0x12000, scoped, tag = 'internal scratch']
  %s0 = inlined_call_operand.hbm [shape: f32[16,32], index: 0, kind: input, shape index: {}]
  %s1 = inlined_call_operand.hbm [shape: f32[16,8,32], index: 1, kind: input, shape index: {}]
  %s2 = inlined_call_operand.hbm [shape: s32[16,1], index: 2, kind: input, shape index: {}]
  %s3 = inlined_call_operand.hbm [shape: f32[32,32], index: 3, kind: input, shape index: {}]
  %s4 = inlined_call_operand.hbm [shape: f32[64,32], index: 4, kind: input, shape index: {}]
  %s5 = inlined_call_operand.hbm [shape: f32[16,32], index: 5, kind: output, shape index: {0}]
  %s6 = inlined_call_operand.hbm [shape: f32[16,8], index: 6, kind: output, shape index: {1}]
  %7 = xla_tuple %s5, %s6
  %s8 = sld [smem:[#allocation0]]
  $region81: #{tpu_custom_call.1} parent=0
    _
  %s10 = ssub.s32 1, %s8
  %s11 = scalar_select 0, %s10, %s8
  $region1: #{tpu_custom_call.1} parent=0
    #allocation2 [shape = 'u8[8192]{0}', space=vmem, size = 0x2000, scoped, tag = 'input window, operand 0']
    #allocation3 [shape = 's32[2]{0}', space=sflag, size = 0x8, scoped, tag = 'scoped memory for tpu_custom_call.1']
    #allocation4 [shape = 's32[2]{0}', space=sflag, size = 0x8, scoped, tag = 'scoped memory for tpu_custom_call.1']
    #allocation5 [shape = 'u8[65536]{0}', space=vmem, size = 0x10000, scoped, tag = 'input window, operand 1']
    #allocation6 [shape = 's32[2]{0}', space=sflag, size = 0x8, scoped, tag = 'scoped memory for tpu_custom_call.1']
    #allocation7 [shape = 'u8[8192]{0}', space=vmem, size = 0x2000, scoped, tag = 'input window, operand 2']
    #allocation8 [shape = 'u8[16384]{0}', space=vmem, size = 0x4000, scoped, tag = 'input window, operand 3, single buffered']
    #allocation9 [shape = 's32[1]{0}', space=sflag, size = 0x4, scoped, tag = 'scoped memory for tpu_custom_call.1']
    #allocation10 [shape = 'u8[32768]{0}', space=vmem, size = 0x8000, scoped, tag = 'input window, operand 4, single buffered']
    #allocation11 [shape = 'u8[8192]{0}', space=vmem, size = 0x2000, scoped, tag = 'output window, operand 0']
    #allocation12 [shape = 'u8[8192]{0}', space=vmem, size = 0x2000, scoped, tag = 'output window, operand 1']
    #allocation13 [shape = 's32[2]{0}', space=sflag, size = 0x8, scoped, tag = 'scoped memory for tpu_custom_call.1']
    %12 = vsyncpa [#allocation3], 0
    %s13 = scalar_lea.sflag [#allocation3], 1
    %14 = vsyncpa %s13, 0
    %15 = vsyncpa [#allocation6], 0
    %s16 = scalar_lea.sflag [#allocation6], 1
    %17 = vsyncpa %s16, 0
    %18 = vsyncpa [#allocation9], 0
    %19 = vsyncpa [#allocation4], 0
    %s20 = scalar_lea.sflag [#allocation4], 1
    %21 = vsyncpa %s20, 0
    %22 = vsyncpa [#allocation13], 0
    %s23 = scalar_lea.sflag [#allocation13], 1
    %24 = vsyncpa %s23, 0
    loop: start=0, step=1, limit=4
    $region2: #{tpu_custom_call.1} parent=1 // loop_pre_header
      _
    $region3: #{tpu_custom_call.1} parent=1 // loop_header
      %s26 = sphi 0, %s30
      %p27 = scmp.ge.s32.totalorder %s26, 4
      %s36 = sphi 0, %s38
      %s39 = sphi 0, %s36
      %s40 = sphi 0, %s39
      %s56 = sphi 0, %s40
      %s62 = sphi 0, %s64
      %s65 = sphi 0, %s62
      %s66 = sphi 0, %s65
      %s82 = sphi 0, %s66
      %s88 = sphi 0, %s90
      %s91 = sphi 0, %s88
      %s92 = sphi 0, %s91
      %s108 = sphi 0, %s92
      %s112 = sphi 0, %s112
      %s114 = sphi 0, %s112
      %s115 = sphi 0, %s114
      %s129 = sphi 0, %s115
      %s133 = sphi 0, %s133
      %s135 = sphi 0, %s133
      %s136 = sphi 0, %s135
      %s150 = sphi 0, %s136
      %s156 = sphi 0, %s158
      %s159 = sphi 0, %s156
      %s160 = sphi 0, %s159
      %s176 = sphi 0, %s160
      %s182 = sphi 0, %s184
      %s185 = sphi 0, %s182
      %s186 = sphi 0, %s185
      %s202 = sphi 0, %s186
    $region4: #{tpu_custom_call.1} parent=1 // loop_header_branch
      %29 = sbr.rel (%p27) target = $region8
    $region5: #{tpu_custom_call.1} parent=1 // loop_body
      %s31 = ssub.s32 %s26, 1
      %s32 = ssub.s32 %s26, 2
      %s33 = sadd.s32 %s26, 1
      %s34 = ssub.s32 %s26, %s33
      %p35 = scmp.eq.s32.totalorder %s34, 0
      %s37 = sadd.s32 %s36, 1
      %s38 = scalar_select %p35, %s36, %s37
      %p41 = pneg %p35
      %p42 = scmp.eq.s32.totalorder %s26, 1
      %p43 = por %p41, %p42
      %p44 = scmp.ne.s32.totalorder %s36, %s39
      %p45 = scmp.eq.s32.totalorder %s26, 0
      %p46 = por %p44, %p45
      %p47 = scmp.ne.s32.totalorder %s36, %s39
      %p48 = scmp.eq.s32.totalorder %s31, 1
      %p49 = por %p47, %p48
      %p50 = scmp.ne.s32.totalorder %s39, %s40
      %p51 = scmp.eq.s32.totalorder %s31, 0
      %p52 = por %p50, %p51
      %p53 = scmp.ne.s32.totalorder %s39, %s40
      %p54 = scmp.eq.s32.totalorder %s32, 1
      %p55 = por %p53, %p54
      %p57 = scmp.ne.s32.totalorder %s40, %s56
      %p58 = scmp.eq.s32.totalorder %s32, 0
      %p59 = por %p57, %p58
      %s60 = ssub.s32 %s26, %s33
      %p61 = scmp.eq.s32.totalorder %s60, 0
      %s63 = sadd.s32 %s62, 1
      %s64 = scalar_select %p61, %s62, %s63
      %p67 = pneg %p61
      %p68 = scmp.eq.s32.totalorder %s26, 1
      %p69 = por %p67, %p68
      %p70 = scmp.ne.s32.totalorder %s62, %s65
      %p71 = scmp.eq.s32.totalorder %s26, 0
      %p72 = por %p70, %p71
      %p73 = scmp.ne.s32.totalorder %s62, %s65
      %p74 = scmp.eq.s32.totalorder %s31, 1
      %p75 = por %p73, %p74
      %p76 = scmp.ne.s32.totalorder %s65, %s66
      %p77 = scmp.eq.s32.totalorder %s31, 0
      %p78 = por %p76, %p77
      %p79 = scmp.ne.s32.totalorder %s65, %s66
      %p80 = scmp.eq.s32.totalorder %s32, 1
      %p81 = por %p79, %p80
      %p83 = scmp.ne.s32.totalorder %s66, %s82
      %p84 = scmp.eq.s32.totalorder %s32, 0
      %p85 = por %p83, %p84
      %s86 = ssub.s32 %s26, %s33
      %p87 = scmp.eq.s32.totalorder %s86, 0
      %s89 = sadd.s32 %s88, 1
      %s90 = scalar_select %p87, %s88, %s89
      %p93 = pneg %p87
      %p94 = scmp.eq.s32.totalorder %s26, 1
      %p95 = por %p93, %p94
      %p96 = scmp.ne.s32.totalorder %s88, %s91
      %p97 = scmp.eq.s32.totalorder %s26, 0
      %p98 = por %p96, %p97
      %p99 = scmp.ne.s32.totalorder %s88, %s91
      %p100 = scmp.eq.s32.totalorder %s31, 1
      %p101 = por %p99, %p100
      %p102 = scmp.ne.s32.totalorder %s91, %s92
      %p103 = scmp.eq.s32.totalorder %s31, 0
      %p104 = por %p102, %p103
      %p105 = scmp.ne.s32.totalorder %s91, %s92
      %p106 = scmp.eq.s32.totalorder %s32, 1
      %p107 = por %p105, %p106
      %p109 = scmp.ne.s32.totalorder %s92, %s108
      %p110 = scmp.eq.s32.totalorder %s32, 0
      %p111 = por %p109, %p110
      %s113 = sadd.s32 %s112, 1
      %p116 = scmp.eq.s32.totalorder %s26, 1
      %p117 = scmp.ne.s32.totalorder %s112, %s114
      %p118 = scmp.eq.s32.totalorder %s26, 0
      %p119 = por %p117, %p118
      %p120 = scmp.ne.s32.totalorder %s112, %s114
      %p121 = scmp.eq.s32.totalorder %s31, 1
      %p122 = por %p120, %p121
      %p123 = scmp.ne.s32.totalorder %s114, %s115
      %p124 = scmp.eq.s32.totalorder %s31, 0
      %p125 = por %p123, %p124
      %p126 = scmp.ne.s32.totalorder %s114, %s115
      %p127 = scmp.eq.s32.totalorder %s32, 1
      %p128 = por %p126, %p127
      %p130 = scmp.ne.s32.totalorder %s115, %s129
      %p131 = scmp.eq.s32.totalorder %s32, 0
      %p132 = por %p130, %p131
      %s134 = sadd.s32 %s133, 1
      %p137 = scmp.eq.s32.totalorder %s26, 1
      %p138 = scmp.ne.s32.totalorder %s133, %s135
      %p139 = scmp.eq.s32.totalorder %s26, 0
      %p140 = por %p138, %p139
      %p141 = scmp.ne.s32.totalorder %s133, %s135
      %p142 = scmp.eq.s32.totalorder %s31, 1
      %p143 = por %p141, %p142
      %p144 = scmp.ne.s32.totalorder %s135, %s136
      %p145 = scmp.eq.s32.totalorder %s31, 0
      %p146 = por %p144, %p145
      %p147 = scmp.ne.s32.totalorder %s135, %s136
      %p148 = scmp.eq.s32.totalorder %s32, 1
      %p149 = por %p147, %p148
      %p151 = scmp.ne.s32.totalorder %s136, %s150
      %p152 = scmp.eq.s32.totalorder %s32, 0
      %p153 = por %p151, %p152
      %s154 = ssub.s32 %s26, %s33
      %p155 = scmp.eq.s32.totalorder %s154, 0
      %s157 = sadd.s32 %s156, 1
      %s158 = scalar_select %p155, %s156, %s157
      %p161 = pneg %p155
      %p162 = scmp.eq.s32.totalorder %s26, 1
      %p163 = por %p161, %p162
      %p164 = scmp.ne.s32.totalorder %s156, %s159
      %p165 = scmp.eq.s32.totalorder %s26, 0
      %p166 = por %p164, %p165
      %p167 = scmp.ne.s32.totalorder %s156, %s159
      %p168 = scmp.eq.s32.totalorder %s31, 1
      %p169 = por %p167, %p168
      %p170 = scmp.ne.s32.totalorder %s159, %s160
      %p171 = scmp.eq.s32.totalorder %s31, 0
      %p172 = por %p170, %p171
      %p173 = scmp.ne.s32.totalorder %s159, %s160
      %p174 = scmp.eq.s32.totalorder %s32, 1
      %p175 = por %p173, %p174
      %p177 = scmp.ne.s32.totalorder %s160, %s176
      %p178 = scmp.eq.s32.totalorder %s32, 0
      %p179 = por %p177, %p178
      %s180 = ssub.s32 %s26, %s33
      %p181 = scmp.eq.s32.totalorder %s180, 0
      %s183 = sadd.s32 %s182, 1
      %s184 = scalar_select %p181, %s182, %s183
      %p187 = pneg %p181
      %p188 = scmp.eq.s32.totalorder %s26, 1
      %p189 = por %p187, %p188
      %p190 = scmp.ne.s32.totalorder %s182, %s185
      %p191 = scmp.eq.s32.totalorder %s26, 0
      %p192 = por %p190, %p191
      %p193 = scmp.ne.s32.totalorder %s182, %s185
      %p194 = scmp.eq.s32.totalorder %s31, 1
      %p195 = por %p193, %p194
      %p196 = scmp.ne.s32.totalorder %s185, %s186
      %p197 = scmp.eq.s32.totalorder %s31, 0
      %p198 = por %p196, %p197
      %p199 = scmp.ne.s32.totalorder %s185, %s186
      %p200 = scmp.eq.s32.totalorder %s32, 1
      %p201 = por %p199, %p200
      %p203 = scmp.ne.s32.totalorder %s186, %s202
      %p204 = scmp.eq.s32.totalorder %s32, 0
      %p205 = por %p203, %p204
      %p206 = scmp.le.s32.totalorder 1, %s26
      %p207 = scmp.lt.s32.totalorder %s26, 3
      %p208 = pnand %p206, %p207
      %p209 = pneg %p208
      // Predicated region
      $region9: #{tpu_custom_call.1} parent=5 // pred_check
        _
      $region10: #{tpu_custom_call.1} parent=5 // pred_check_branch
        %211 = sbr.rel (%p208) target = $region12
      $region11: #{tpu_custom_call.1} parent=5 // pred_region
        %s212 = ssub.s32 %s26, 1
        // Predicated region
        $region13: #{tpu_custom_call.1} parent=11 // pred_check
          %p213 = pneg %p125
        $region14: #{tpu_custom_call.1} parent=11 // pred_check_branch
          %215 = sbr.rel (%p213) target = $region16
        $region15: #{tpu_custom_call.1} parent=11 // pred_region
          %s217 = ssub.s32 512, 512
          %218 = vsyncadd [#allocation9], %s217
          %s219 = sshll.u32 [#allocation8], 4
          %s220 = int_to_ptr.vmem [resolvable:$true] %s219
          %225 = dma.hbm_to_vmem [thread:$0]  %s3, 512, %s220, [#allocation9], 128, 128, 8
        $region16: #{tpu_custom_call.1} parent=11 // pred_fallthru
          _
        // Predicated region
        $region17: #{tpu_custom_call.1} parent=11 // pred_check
          %p226 = pneg %p146
        $region18: #{tpu_custom_call.1} parent=11 // pred_check_branch
          %228 = sbr.rel (%p226) target = $region20
        $region19: #{tpu_custom_call.1} parent=11 // pred_region
          %s230 = ssub.s32 1024, 1024
          %231 = vsyncadd [#allocation9], %s230
          %s232 = sshll.u32 [#allocation10], 4
          %s233 = int_to_ptr.vmem [resolvable:$true] %s232
          %238 = dma.hbm_to_vmem [thread:$0]  %s4, 1024, %s233, [#allocation9], 128, 128, 8
        $region20: #{tpu_custom_call.1} parent=11 // pred_fallthru
          _
      $region12: #{tpu_custom_call.1} parent=5 // pred_fallthru
        _
      %p239 = scmp.lt.s32.totalorder %s26, 2
      // Predicated region
      $region21: #{tpu_custom_call.1} parent=5 // pred_check
        %p240 = pneg %p239
      $region22: #{tpu_custom_call.1} parent=5 // pred_check_branch
        %242 = sbr.rel (%p240) target = $region24
      $region23: #{tpu_custom_call.1} parent=5 // pred_region
        // Predicated region
        $region25: #{tpu_custom_call.1} parent=23 // pred_check
          %p243 = pneg %p46
        $region26: #{tpu_custom_call.1} parent=23 // pred_check_branch
          %245 = sbr.rel (%p243) target = $region28
        $region27: #{tpu_custom_call.1} parent=23 // pred_region
          %s246 = sand.u32 %s36, 1
          %s247 = scalar_lea.sflag [#allocation3], %s246
          %s248 = sand.u32 %s36, 1
          %s249 = smul.addr %s248, 8
          %s250 = scalar_lea.vmem [#allocation2], %s249
          %s252 = ssub.s32 128, 128
          %253 = vsyncadd %s247, %s252
          %s254 = smul.addr %s26, 128
          %s255 = scalar_lea.hbm %s0, %s254
          %s257 = sshll.u32 %s250, 4
          %s258 = int_to_ptr.vmem [resolvable:$true] %s257
          %260 = dma.hbm_to_vmem [thread:$0]  %s255, 128, %s258, %s247
        $region28: #{tpu_custom_call.1} parent=23 // pred_fallthru
          _
        // Predicated region
        $region29: #{tpu_custom_call.1} parent=23 // pred_check
          %p261 = pneg %p72
        $region30: #{tpu_custom_call.1} parent=23 // pred_check_branch
          %263 = sbr.rel (%p261) target = $region32
        $region31: #{tpu_custom_call.1} parent=23 // pred_region
          %s264 = sand.u32 %s26, 1
          %s265 = scalar_lea.sflag [#allocation6], %s264
          %s266 = sand.u32 %s62, 1
          %s267 = smul.addr %s266, 64
          %s268 = scalar_lea.vmem [#allocation5], %s267
          %s269 = smul.u32 8, %s26
          %s271 = ssub.s32 1024, 1024
          %272 = vsyncadd %s265, %s271
          %s273 = smul.addr %s269, 128
          %s274 = scalar_lea.hbm %s1, %s273
          %s275 = sshll.u32 %s268, 4
          %s276 = int_to_ptr.vmem [resolvable:$true] %s275
          %281 = dma.hbm_to_vmem [thread:$0]  %s274, 1024, %s276, %s265, 128, 128, 8
        $region32: #{tpu_custom_call.1} parent=23 // pred_fallthru
          _
        // Predicated region
        $region33: #{tpu_custom_call.1} parent=23 // pred_check
          %p282 = pneg %p98
        $region34: #{tpu_custom_call.1} parent=23 // pred_check_branch
          %284 = sbr.rel (%p282) target = $region36
        $region35: #{tpu_custom_call.1} parent=23 // pred_region
          %s285 = sand.u32 %s26, 1
          %s286 = scalar_lea.sflag [#allocation6], %s285
          %s287 = sand.u32 %s88, 1
          %s288 = smul.addr %s287, 8
          %s289 = scalar_lea.vmem [#allocation7], %s288
          %s291 = ssub.s32 128, 128
          %292 = vsyncadd %s286, %s291
          %s293 = smul.addr %s26, 128
          %s294 = scalar_lea.hbm %s2, %s293
          %s296 = sshll.u32 %s289, 4
          %s297 = int_to_ptr.vmem [resolvable:$true] %s296
          %299 = dma.hbm_to_vmem [thread:$0]  %s294, 128, %s297, %s286
        $region36: #{tpu_custom_call.1} parent=23 // pred_fallthru
          _
      $region24: #{tpu_custom_call.1} parent=5 // pred_fallthru
        _
      %p300 = scmp.le.s32.totalorder 1, %s26
      %p301 = scmp.lt.s32.totalorder %s26, 3
      %p302 = pnand %p300, %p301
      %p303 = pneg %p302
      // Predicated region
      $region37: #{tpu_custom_call.1} parent=5 // pred_check
        _
      $region38: #{tpu_custom_call.1} parent=5 // pred_check_branch
        %305 = sbr.rel (%p302) target = $region40
      $region39: #{tpu_custom_call.1} parent=5 // pred_region
        %s306 = ssub.s32 %s26, 1
        %s307 = sand.u32 %s39, 1
        %s308 = scalar_lea.sflag [#allocation3], %s307
        %s309 = sand.u32 %s39, 1
        %s310 = smul.addr %s309, 8
        %s311 = scalar_lea.vmem [#allocation2], %s310
        // Predicated region
        $region41: #{tpu_custom_call.1} parent=39 // pred_check
          %p312 = pneg %p52
        $region42: #{tpu_custom_call.1} parent=39 // pred_check_branch
          %314 = sbr.rel (%p312) target = $region44
        $region43: #{tpu_custom_call.1} parent=39 // pred_region
          %315 = dma.done %s308, 128
        $region44: #{tpu_custom_call.1} parent=39 // pred_fallthru
          _
        %s316 = sand.u32 %s31, 1
        %s317 = scalar_lea.sflag [#allocation6], %s316
        %s318 = sand.u32 %s65, 1
        %s319 = smul.addr %s318, 64
        %s320 = scalar_lea.vmem [#allocation5], %s319
        // Predicated region
        $region45: #{tpu_custom_call.1} parent=39 // pred_check
          %p321 = pneg %p78
        $region46: #{tpu_custom_call.1} parent=39 // pred_check_branch
          %323 = sbr.rel (%p321) target = $region48
        $region47: #{tpu_custom_call.1} parent=39 // pred_region
          %324 = dma.done %s317, 1024
        $region48: #{tpu_custom_call.1} parent=39 // pred_fallthru
          _
        %s325 = sand.u32 %s31, 1
        %s326 = scalar_lea.sflag [#allocation6], %s325
        %s327 = sand.u32 %s91, 1
        %s328 = smul.addr %s327, 8
        %s329 = scalar_lea.vmem [#allocation7], %s328
        // Predicated region
        $region49: #{tpu_custom_call.1} parent=39 // pred_check
          %p330 = pneg %p104
        $region50: #{tpu_custom_call.1} parent=39 // pred_check_branch
          %332 = sbr.rel (%p330) target = $region52
        $region51: #{tpu_custom_call.1} parent=39 // pred_region
          %333 = dma.done %s326, 128
        $region52: #{tpu_custom_call.1} parent=39 // pred_fallthru
          _
        // Predicated region
        $region53: #{tpu_custom_call.1} parent=39 // pred_check
          %p334 = pneg %p125
        $region54: #{tpu_custom_call.1} parent=39 // pred_check_branch
          %336 = sbr.rel (%p334) target = $region56
        $region55: #{tpu_custom_call.1} parent=39 // pred_region
          %337 = dma.done [#allocation9], 512
        $region56: #{tpu_custom_call.1} parent=39 // pred_fallthru
          _
        // Predicated region
        $region57: #{tpu_custom_call.1} parent=39 // pred_check
          %p338 = pneg %p146
        $region58: #{tpu_custom_call.1} parent=39 // pred_check_branch
          %340 = sbr.rel (%p338) target = $region60
        $region59: #{tpu_custom_call.1} parent=39 // pred_region
          %341 = dma.done [#allocation9], 1024
        $region60: #{tpu_custom_call.1} parent=39 // pred_fallthru
          _
        %s342 = sand.u32 %s39, 1
        %s343 = scalar_lea.sflag [#allocation3], %s342
        %s344 = sand.u32 %s39, 1
        %s345 = smul.addr %s344, 8
        %s346 = scalar_lea.vmem [#allocation2], %s345
        %p347 = pneg %p52
        %p348 = pneg %p49
        %s349 = sand.u32 %s31, 1
        %s350 = scalar_lea.sflag [#allocation6], %s349
        %s351 = sand.u32 %s65, 1
        %s352 = smul.addr %s351, 64
        %s353 = scalar_lea.vmem [#allocation5], %s352
        %p354 = pneg %p78
        %p355 = pneg %p75
        %s356 = sand.u32 %s31, 1
        %s357 = scalar_lea.sflag [#allocation6], %s356
        %s358 = sand.u32 %s91, 1
        %s359 = smul.addr %s358, 8
        %s360 = scalar_lea.vmem [#allocation7], %s359
        %p361 = pneg %p104
        %p362 = pneg %p101
        %p363 = pneg %p125
        %p364 = pneg %p122
        %p365 = pneg %p146
        %p366 = pneg %p143
        %p367 = pneg %p172
        %p368 = pneg %p169
        %s369 = sand.u32 %s159, 1
        %s370 = scalar_lea.sflag [#allocation4], %s369
        %s371 = sand.u32 %s159, 1
        %s372 = smul.addr %s371, 8
        %s373 = scalar_lea.vmem [#allocation11], %s372
        %p374 = pneg %p198
        %p375 = pneg %p195
        %s376 = sand.u32 %s185, 1
        %s377 = scalar_lea.sflag [#allocation13], %s376
        %s378 = sand.u32 %s185, 1
        %s379 = smul.addr %s378, 8
        %s380 = scalar_lea.vmem [#allocation12], %s379
        %s381 = smul.u32 8, %s31
        %v382 = vld [vmem:[%s311] sm:$0xff]
        %v383 = vld [vmem:[%s320] sm:$0xff]
        %v384 = vld [vmem:[%s320 + $0x8] sm:$0xff]
        %v385 = vld [vmem:[%s320 + $0x10] sm:$0xff]
        %v386 = vld [vmem:[%s320 + $0x18] sm:$0xff]
        %v387 = vld [vmem:[%s320 + $0x20] sm:$0xff]
        %v388 = vld [vmem:[%s320 + $0x28] sm:$0xff]
        %v389 = vld [vmem:[%s320 + $0x30] sm:$0xff]
        %v390 = vld [vmem:[%s320 + $0x38] sm:$0xff]
        %v391 = vld [vmem:[%s329] sm:$0xff]
        %v392 = vld [vmem:[#allocation8] sm:$0xff]
        %v393 = vld [vmem:[#allocation8 + $0x8] sm:$0xff]
        %v394 = vld [vmem:[#allocation8 + $0x10] sm:$0xff]
        %v395 = vld [vmem:[#allocation8 + $0x18] sm:$0xff]
        %vm396 = vcmask 261120
        %v398 = vsel %vm396, %v382, 0
        %400 = vmatprep.subr.mxu0 0.0
        %v401 = vand.u32 %v392, 4294901760
        %402 = vmatpush1.msra.mxu0 %v401
        %403 = vmatprep.subr.mxu0 0.0
        %v404 = vand.u32 %v393, 4294901760
        %405 = vmatpush1.msra.mxu0 %v404
        %406 = vmatprep.subr.mxu0 0.0
        %v407 = vand.u32 %v394, 4294901760
        %408 = vmatpush1.msra.mxu0 %v407
        %409 = vmatprep.subr.mxu0 0.0
        %v410 = vand.u32 %v395, 4294901760
        %411 = vmatpush1.msra.mxu0 %v410
        %412 = vmatprep.subr.mxu0 0.0
        %413 = vmatpush1.msra.mxu0 0.0
        %414 = vmatprep.subr.mxu0 0.0
        %415 = vmatpush1.msra.mxu0 0.0
        %416 = vmatprep.subr.mxu0 0.0
        %417 = vmatpush1.msra.mxu0 0.0
        %418 = vmatprep.subr.mxu0 0.0
        %419 = vmatpush1.msra.mxu0 0.0
        %420 = vmatprep.subr.mxu0 0.0
        %421 = vmatpush1.msra.mxu0 0.0
        %422 = vmatprep.subr.mxu0 0.0
        %423 = vmatpush1.msra.mxu0 0.0
        %424 = vmatprep.subr.mxu0 0.0
        %425 = vmatpush1.msra.mxu0 0.0
        %426 = vmatprep.subr.mxu0 0.0
        %427 = vmatpush1.msra.mxu0 0.0
        %428 = vmatprep.subr.mxu0 0.0
        %429 = vmatpush1.msra.mxu0 0.0
        %430 = vmatprep.subr.mxu0 0.0
        %431 = vmatpush1.msra.mxu0 0.0
        %432 = vmatprep.subr.mxu0 0.0
        %433 = vmatpush1.msra.mxu0 0.0
        %434 = vmatprep.subr.mxu0 0.0
        %435 = vmatpush1.msra.mxu0 0.0
        %436 = vmatprep.subr.mxu0 0.0
        %437 = vmatpush1.msra.mxu0 0.0
        %438 = vmatprep.subr.mxu0 0.0
        %439 = vmatpush1.msra.mxu0 0.0
        %440 = vmatprep.subr.mxu0 0.0
        %441 = vmatpush1.msra.mxu0 0.0
        %442 = vmatprep.subr.mxu0 0.0
        %443 = vmatpush1.msra.mxu0 0.0
        %444 = vmatprep.subr.mxu0 0.0
        %445 = vmatpush1.msra.mxu0 0.0
        %446 = vmatprep.subr.mxu0 0.0
        %447 = vmatpush1.msra.mxu0 0.0
        %448 = vmatprep.subr.mxu0 0.0
        %449 = vmatpush1.msra.mxu0 0.0
        %450 = vmatprep.subr.mxu0 0.0
        %451 = vmatpush1.msra.mxu0 0.0
        %452 = vmatprep.subr.mxu0 0.0
        %453 = vmatpush1.msra.mxu0 0.0
        %454 = vmatprep.subr.mxu0 0.0
        %455 = vmatpush1.msra.mxu0 0.0
        %456 = vmatprep.subr.mxu0 0.0
        %457 = vmatpush1.msra.mxu0 0.0
        %458 = vmatprep.subr.mxu0 0.0
        %459 = vmatpush1.msra.mxu0 0.0
        %460 = vmatprep.subr.mxu0 0.0
        %461 = vmatpush1.msra.mxu0 0.0
        %462 = vmatprep.subr.mxu0 0.0
        %463 = vmatpush1.msra.mxu0 0.0
        %464 = vmatprep.subr.mxu0 0.0
        %465 = vmatpush1.msra.mxu0 0.0
        %466 = vmatprep.subr.mxu0 0.0
        %467 = vmatpush1.msra.mxu0 0.0
        %468 = vmatprep.mubr.f32.mxu0 0.0
        %v469 = vand.u32 %v398, 4294901760
        %v470 = vsub.f32 %v398, %v469
        %v471 = vand.u32 %v470, 4294901760
        %v472 = vsub.f32 %v470, %v471
        %v473 = vand.u32 %v472, 4294901760
        %474 = vmatmul.mubr.f32.gmra.mrb[0].mxu0 %v473
        %v475 = vpop.f32.mrb[0].mxu0
        %v476 = vadd.f32 0.0, %v475
        %v477 = vpop.f32.mrb[0].mxu0
        %478 = vdwg.mxu0
        %479 = vmatprep.subr.mxu0 0.0
        %v480 = vand.u32 %v392, 4294901760
        %v481 = vsub.f32 %v392, %v480
        %v482 = vand.u32 %v481, 4294901760
        %v483 = vsub.f32 %v481, %v482
        %v484 = vand.u32 %v483, 4294901760
        %485 = vmatpush1.msra.mxu0 %v484
        %486 = vmatprep.subr.mxu0 0.0
        %v487 = vand.u32 %v393, 4294901760
        %v488 = vsub.f32 %v393, %v487
        %v489 = vand.u32 %v488, 4294901760
        %v490 = vsub.f32 %v488, %v489
        %v491 = vand.u32 %v490, 4294901760
        %492 = vmatpush1.msra.mxu0 %v491
        %493 = vmatprep.subr.mxu0 0.0
        %v494 = vand.u32 %v394, 4294901760
        %v495 = vsub.f32 %v394, %v494
        %v496 = vand.u32 %v495, 4294901760
        %v497 = vsub.f32 %v495, %v496
        %v498 = vand.u32 %v497, 4294901760
        %499 = vmatpush1.msra.mxu0 %v498
        %500 = vmatprep.subr.mxu0 0.0
        %v501 = vand.u32 %v395, 4294901760
        %v502 = vsub.f32 %v395, %v501
        %v503 = vand.u32 %v502, 4294901760
        %v504 = vsub.f32 %v502, %v503
        %v505 = vand.u32 %v504, 4294901760
        %506 = vmatpush1.msra.mxu0 %v505
        %507 = vmatprep.subr.mxu0 0.0
        %508 = vmatpush1.msra.mxu0 0.0
        %509 = vmatprep.subr.mxu0 0.0
        %510 = vmatpush1.msra.mxu0 0.0
        %511 = vmatprep.subr.mxu0 0.0
        %512 = vmatpush1.msra.mxu0 0.0
        %513 = vmatprep.subr.mxu0 0.0
        %514 = vmatpush1.msra.mxu0 0.0
        %515 = vmatprep.subr.mxu0 0.0
        %516 = vmatpush1.msra.mxu0 0.0
        %517 = vmatprep.subr.mxu0 0.0
        %518 = vmatpush1.msra.mxu0 0.0
        %519 = vmatprep.subr.mxu0 0.0
        %520 = vmatpush1.msra.mxu0 0.0
        %521 = vmatprep.subr.mxu0 0.0
        %522 = vmatpush1.msra.mxu0 0.0
        %523 = vmatprep.subr.mxu0 0.0
        %524 = vmatpush1.msra.mxu0 0.0
        %525 = vmatprep.subr.mxu0 0.0
        %526 = vmatpush1.msra.mxu0 0.0
        %527 = vmatprep.subr.mxu0 0.0
        %528 = vmatpush1.msra.mxu0 0.0
        %529 = vmatprep.subr.mxu0 0.0
        %530 = vmatpush1.msra.mxu0 0.0
        %531 = vmatprep.subr.mxu0 0.0
        %532 = vmatpush1.msra.mxu0 0.0
        %533 = vmatprep.subr.mxu0 0.0
        %534 = vmatpush1.msra.mxu0 0.0
        %535 = vmatprep.subr.mxu0 0.0
        %536 = vmatpush1.msra.mxu0 0.0
        %537 = vmatprep.subr.mxu0 0.0
        %538 = vmatpush1.msra.mxu0 0.0
        %539 = vmatprep.subr.mxu0 0.0
        %540 = vmatpush1.msra.mxu0 0.0
        %541 = vmatprep.subr.mxu0 0.0
        %542 = vmatpush1.msra.mxu0 0.0
        %543 = vmatprep.subr.mxu0 0.0
        %544 = vmatpush1.msra.mxu0 0.0
        %545 = vmatprep.subr.mxu0 0.0
        %546 = vmatpush1.msra.mxu0 0.0
        %547 = vmatprep.subr.mxu0 0.0
        %548 = vmatpush1.msra.mxu0 0.0
        %549 = vmatprep.subr.mxu0 0.0
        %550 = vmatpush1.msra.mxu0 0.0
        %551 = vmatprep.subr.mxu0 0.0
        %552 = vmatpush1.msra.mxu0 0.0
        %553 = vmatprep.subr.mxu0 0.0
        %554 = vmatpush1.msra.mxu0 0.0
        %555 = vmatprep.subr.mxu0 0.0
        %556 = vmatpush1.msra.mxu0 0.0
        %557 = vmatprep.subr.mxu0 0.0
        %558 = vmatpush1.msra.mxu0 0.0
        %559 = vmatprep.subr.mxu0 0.0
        %560 = vmatpush1.msra.mxu0 0.0
        %561 = vmatprep.subr.mxu0 0.0
        %562 = vmatpush1.msra.mxu0 0.0
        %563 = vmatprep.mubr.f32.mxu0 0.0
        %v564 = vand.u32 %v398, 4294901760
        %565 = vmatmul.mubr.f32.gmra.mrb[0].mxu0 %v564
        %v566 = vpop.f32.mrb[0].mxu0
        %v567 = vadd.f32 %v476, %v566
        %v568 = vpop.f32.mrb[0].mxu0
        %569 = vdwg.mxu0
        %570 = vmatprep.subr.mxu0 0.0
        %v571 = vand.u32 %v392, 4294901760
        %v572 = vsub.f32 %v392, %v571
        %573 = vmatpush1.msra.mxu0 %v572
        %574 = vmatprep.subr.mxu0 0.0
        %v575 = vand.u32 %v393, 4294901760
        %v576 = vsub.f32 %v393, %v575
        %577 = vmatpush1.msra.mxu0 %v576
        %578 = vmatprep.subr.mxu0 0.0
        %v579 = vand.u32 %v394, 4294901760
        %v580 = vsub.f32 %v394, %v579
        %581 = vmatpush1.msra.mxu0 %v580
        %582 = vmatprep.subr.mxu0 0.0
        %v583 = vand.u32 %v395, 4294901760
        %v584 = vsub.f32 %v395, %v583
        %585 = vmatpush1.msra.mxu0 %v584
        %586 = vmatprep.subr.mxu0 0.0
        %587 = vmatpush1.msra.mxu0 0.0
        %588 = vmatprep.subr.mxu0 0.0
        %589 = vmatpush1.msra.mxu0 0.0
        %590 = vmatprep.subr.mxu0 0.0
        %591 = vmatpush1.msra.mxu0 0.0
        %592 = vmatprep.subr.mxu0 0.0
        %593 = vmatpush1.msra.mxu0 0.0
        %594 = vmatprep.subr.mxu0 0.0
        %595 = vmatpush1.msra.mxu0 0.0
        %596 = vmatprep.subr.mxu0 0.0
        %597 = vmatpush1.msra.mxu0 0.0
        %598 = vmatprep.subr.mxu0 0.0
        %599 = vmatpush1.msra.mxu0 0.0
        %600 = vmatprep.subr.mxu0 0.0
        %601 = vmatpush1.msra.mxu0 0.0
        %602 = vmatprep.subr.mxu0 0.0
        %603 = vmatpush1.msra.mxu0 0.0
        %604 = vmatprep.subr.mxu0 0.0
        %605 = vmatpush1.msra.mxu0 0.0
        %606 = vmatprep.subr.mxu0 0.0
        %607 = vmatpush1.msra.mxu0 0.0
        %608 = vmatprep.subr.mxu0 0.0
        %609 = vmatpush1.msra.mxu0 0.0
        %610 = vmatprep.subr.mxu0 0.0
        %611 = vmatpush1.msra.mxu0 0.0
        %612 = vmatprep.subr.mxu0 0.0
        %613 = vmatpush1.msra.mxu0 0.0
        %614 = vmatprep.subr.mxu0 0.0
        %615 = vmatpush1.msra.mxu0 0.0
        %616 = vmatprep.subr.mxu0 0.0
        %617 = vmatpush1.msra.mxu0 0.0
        %618 = vmatprep.subr.mxu0 0.0
        %619 = vmatpush1.msra.mxu0 0.0
        %620 = vmatprep.subr.mxu0 0.0
        %621 = vmatpush1.msra.mxu0 0.0
        %622 = vmatprep.subr.mxu0 0.0
        %623 = vmatpush1.msra.mxu0 0.0
        %624 = vmatprep.subr.mxu0 0.0
        %625 = vmatpush1.msra.mxu0 0.0
        %626 = vmatprep.subr.mxu0 0.0
        %627 = vmatpush1.msra.mxu0 0.0
        %628 = vmatprep.subr.mxu0 0.0
        %629 = vmatpush1.msra.mxu0 0.0
        %630 = vmatprep.subr.mxu0 0.0
        %631 = vmatpush1.msra.mxu0 0.0
        %632 = vmatprep.subr.mxu0 0.0
        %633 = vmatpush1.msra.mxu0 0.0
        %634 = vmatprep.subr.mxu0 0.0
        %635 = vmatpush1.msra.mxu0 0.0
        %636 = vmatprep.subr.mxu0 0.0
        %637 = vmatpush1.msra.mxu0 0.0
        %638 = vmatprep.subr.mxu0 0.0
        %639 = vmatpush1.msra.mxu0 0.0
        %640 = vmatprep.subr.mxu0 0.0
        %641 = vmatpush1.msra.mxu0 0.0
        %642 = vmatprep.mubr.f32.mxu0 0.0
        %v643 = vand.u32 %v398, 4294901760
        %v644 = vsub.f32 %v398, %v643
        %645 = vmatmul.mubr.f32.gmra.mrb[0].mxu0 %v644
        %v646 = vpop.f32.mrb[0].mxu0
        %v647 = vadd.f32 %v567, %v646
        %v648 = vpop.f32.mrb[0].mxu0
        %649 = vdwg.mxu0
        %650 = vmatprep.subr.mxu0 0.0
        %v651 = vand.u32 %v392, 4294901760
        %652 = vmatpush1.msra.mxu0 %v651
        %653 = vmatprep.subr.mxu0 0.0
        %v654 = vand.u32 %v393, 4294901760
        %655 = vmatpush1.msra.mxu0 %v654
        %656 = vmatprep.subr.mxu0 0.0
        %v657 = vand.u32 %v394, 4294901760
        %658 = vmatpush1.msra.mxu0 %v657
        %659 = vmatprep.subr.mxu0 0.0
        %v660 = vand.u32 %v395, 4294901760
        %661 = vmatpush1.msra.mxu0 %v660
        %662 = vmatprep.subr.mxu0 0.0
        %663 = vmatpush1.msra.mxu0 0.0
        %664 = vmatprep.subr.mxu0 0.0
        %665 = vmatpush1.msra.mxu0 0.0
        %666 = vmatprep.subr.mxu0 0.0
        %667 = vmatpush1.msra.mxu0 0.0
        %668 = vmatprep.subr.mxu0 0.0
        %669 = vmatpush1.msra.mxu0 0.0
        %670 = vmatprep.subr.mxu0 0.0
        %671 = vmatpush1.msra.mxu0 0.0
        %672 = vmatprep.subr.mxu0 0.0
        %673 = vmatpush1.msra.mxu0 0.0
        %674 = vmatprep.subr.mxu0 0.0
        %675 = vmatpush1.msra.mxu0 0.0
        %676 = vmatprep.subr.mxu0 0.0
        %677 = vmatpush1.msra.mxu0 0.0
        %678 = vmatprep.subr.mxu0 0.0
        %679 = vmatpush1.msra.mxu0 0.0
        %680 = vmatprep.subr.mxu0 0.0
        %681 = vmatpush1.msra.mxu0 0.0
        %682 = vmatprep.subr.mxu0 0.0
        %683 = vmatpush1.msra.mxu0 0.0
        %684 = vmatprep.subr.mxu0 0.0
        %685 = vmatpush1.msra.mxu0 0.0
        %686 = vmatprep.subr.mxu0 0.0
        %687 = vmatpush1.msra.mxu0 0.0
        %688 = vmatprep.subr.mxu0 0.0
        %689 = vmatpush1.msra.mxu0 0.0
        %690 = vmatprep.subr.mxu0 0.0
        %691 = vmatpush1.msra.mxu0 0.0
        %692 = vmatprep.subr.mxu0 0.0
        %693 = vmatpush1.msra.mxu0 0.0
        %694 = vmatprep.subr.mxu0 0.0
        %695 = vmatpush1.msra.mxu0 0.0
        %696 = vmatprep.subr.mxu0 0.0
        %697 = vmatpush1.msra.mxu0 0.0
        %698 = vmatprep.subr.mxu0 0.0
        %699 = vmatpush1.msra.mxu0 0.0
        %700 = vmatprep.subr.mxu0 0.0
        %701 = vmatpush1.msra.mxu0 0.0
        %702 = vmatprep.subr.mxu0 0.0
        %703 = vmatpush1.msra.mxu0 0.0
        %704 = vmatprep.subr.mxu0 0.0
        %705 = vmatpush1.msra.mxu0 0.0
        %706 = vmatprep.subr.mxu0 0.0
        %707 = vmatpush1.msra.mxu0 0.0
        %708 = vmatprep.subr.mxu0 0.0
        %709 = vmatpush1.msra.mxu0 0.0
        %710 = vmatprep.subr.mxu0 0.0
        %711 = vmatpush1.msra.mxu0 0.0
        %712 = vmatprep.subr.mxu0 0.0
        %713 = vmatpush1.msra.mxu0 0.0
        %714 = vmatprep.subr.mxu0 0.0
        %715 = vmatpush1.msra.mxu0 0.0
        %716 = vmatprep.subr.mxu0 0.0
        %717 = vmatpush1.msra.mxu0 0.0
        %718 = vmatprep.mubr.f32.mxu0 0.0
        %v719 = vand.u32 %v398, 4294901760
        %v720 = vsub.f32 %v398, %v719
        %v721 = vand.u32 %v720, 4294901760
        %722 = vmatmul.mubr.f32.gmra.mrb[0].mxu0 %v721
        %v723 = vpop.f32.mrb[0].mxu0
        %v724 = vadd.f32 %v647, %v723
        %v725 = vpop.f32.mrb[0].mxu0
        %726 = vdwg.mxu0
        %727 = vmatprep.subr.mxu0 0.0
        %v728 = vand.u32 %v392, 4294901760
        %v729 = vsub.f32 %v392, %v728
        %v730 = vand.u32 %v729, 4294901760
        %731 = vmatpush1.msra.mxu0 %v730
        %732 = vmatprep.subr.mxu0 0.0
        %v733 = vand.u32 %v393, 4294901760
        %v734 = vsub.f32 %v393, %v733
        %v735 = vand.u32 %v734, 4294901760
        %736 = vmatpush1.msra.mxu0 %v735
        %737 = vmatprep.subr.mxu0 0.0
        %v738 = vand.u32 %v394, 4294901760
        %v739 = vsub.f32 %v394, %v738
        %v740 = vand.u32 %v739, 4294901760
        %741 = vmatpush1.msra.mxu0 %v740
        %742 = vmatprep.subr.mxu0 0.0
        %v743 = vand.u32 %v395, 4294901760
        %v744 = vsub.f32 %v395, %v743
        %v745 = vand.u32 %v744, 4294901760
        %746 = vmatpush1.msra.mxu0 %v745
        %747 = vmatprep.subr.mxu0 0.0
        %748 = vmatpush1.msra.mxu0 0.0
        %749 = vmatprep.subr.mxu0 0.0
        %750 = vmatpush1.msra.mxu0 0.0
        %751 = vmatprep.subr.mxu0 0.0
        %752 = vmatpush1.msra.mxu0 0.0
        %753 = vmatprep.subr.mxu0 0.0
        %754 = vmatpush1.msra.mxu0 0.0
        %755 = vmatprep.subr.mxu0 0.0
        %756 = vmatpush1.msra.mxu0 0.0
        %757 = vmatprep.subr.mxu0 0.0
        %758 = vmatpush1.msra.mxu0 0.0
        %759 = vmatprep.subr.mxu0 0.0
        %760 = vmatpush1.msra.mxu0 0.0
        %761 = vmatprep.subr.mxu0 0.0
        %762 = vmatpush1.msra.mxu0 0.0
        %763 = vmatprep.subr.mxu0 0.0
        %764 = vmatpush1.msra.mxu0 0.0
        %765 = vmatprep.subr.mxu0 0.0
        %766 = vmatpush1.msra.mxu0 0.0
        %767 = vmatprep.subr.mxu0 0.0
        %768 = vmatpush1.msra.mxu0 0.0
        %769 = vmatprep.subr.mxu0 0.0
        %770 = vmatpush1.msra.mxu0 0.0
        %771 = vmatprep.subr.mxu0 0.0
        %772 = vmatpush1.msra.mxu0 0.0
        %773 = vmatprep.subr.mxu0 0.0
        %774 = vmatpush1.msra.mxu0 0.0
        %775 = vmatprep.subr.mxu0 0.0
        %776 = vmatpush1.msra.mxu0 0.0
        %777 = vmatprep.subr.mxu0 0.0
        %778 = vmatpush1.msra.mxu0 0.0
        %779 = vmatprep.subr.mxu0 0.0
        %780 = vmatpush1.msra.mxu0 0.0
        %781 = vmatprep.subr.mxu0 0.0
        %782 = vmatpush1.msra.mxu0 0.0
        %783 = vmatprep.subr.mxu0 0.0
        %784 = vmatpush1.msra.mxu0 0.0
        %785 = vmatprep.subr.mxu0 0.0
        %786 = vmatpush1.msra.mxu0 0.0
        %787 = vmatprep.subr.mxu0 0.0
        %788 = vmatpush1.msra.mxu0 0.0
        %789 = vmatprep.subr.mxu0 0.0
        %790 = vmatpush1.msra.mxu0 0.0
        %791 = vmatprep.subr.mxu0 0.0
        %792 = vmatpush1.msra.mxu0 0.0
        %793 = vmatprep.subr.mxu0 0.0
        %794 = vmatpush1.msra.mxu0 0.0
        %795 = vmatprep.subr.mxu0 0.0
        %796 = vmatpush1.msra.mxu0 0.0
        %797 = vmatprep.subr.mxu0 0.0
        %798 = vmatpush1.msra.mxu0 0.0
        %799 = vmatprep.subr.mxu0 0.0
        %800 = vmatpush1.msra.mxu0 0.0
        %801 = vmatprep.subr.mxu0 0.0
        %802 = vmatpush1.msra.mxu0 0.0
        %803 = vmatprep.mubr.f32.mxu0 0.0
        %v804 = vand.u32 %v398, 4294901760
        %805 = vmatmul.mubr.f32.gmra.mrb[0].mxu0 %v804
        %v806 = vpop.f32.mrb[0].mxu0
        %v807 = vadd.f32 %v724, %v806
        %v808 = vpop.f32.mrb[0].mxu0
        %809 = vdwg.mxu0
        %810 = vmatprep.subr.mxu0 0.0
        %v811 = vand.u32 %v392, 4294901760
        %812 = vmatpush1.msra.mxu0 %v811
        %813 = vmatprep.subr.mxu0 0.0
        %v814 = vand.u32 %v393, 4294901760
        %815 = vmatpush1.msra.mxu0 %v814
        %816 = vmatprep.subr.mxu0 0.0
        %v817 = vand.u32 %v394, 4294901760
        %818 = vmatpush1.msra.mxu0 %v817
        %819 = vmatprep.subr.mxu0 0.0
        %v820 = vand.u32 %v395, 4294901760
        %821 = vmatpush1.msra.mxu0 %v820
        %822 = vmatprep.subr.mxu0 0.0
        %823 = vmatpush1.msra.mxu0 0.0
        %824 = vmatprep.subr.mxu0 0.0
        %825 = vmatpush1.msra.mxu0 0.0
        %826 = vmatprep.subr.mxu0 0.0
        %827 = vmatpush1.msra.mxu0 0.0
        %828 = vmatprep.subr.mxu0 0.0
        %829 = vmatpush1.msra.mxu0 0.0
        %830 = vmatprep.subr.mxu0 0.0
        %831 = vmatpush1.msra.mxu0 0.0
        %832 = vmatprep.subr.mxu0 0.0
        %833 = vmatpush1.msra.mxu0 0.0
        %834 = vmatprep.subr.mxu0 0.0
        %835 = vmatpush1.msra.mxu0 0.0
        %836 = vmatprep.subr.mxu0 0.0
        %837 = vmatpush1.msra.mxu0 0.0
        %838 = vmatprep.subr.mxu0 0.0
        %839 = vmatpush1.msra.mxu0 0.0
        %840 = vmatprep.subr.mxu0 0.0
        %841 = vmatpush1.msra.mxu0 0.0
        %842 = vmatprep.subr.mxu0 0.0
        %843 = vmatpush1.msra.mxu0 0.0
        %844 = vmatprep.subr.mxu0 0.0
        %845 = vmatpush1.msra.mxu0 0.0
        %846 = vmatprep.subr.mxu0 0.0
        %847 = vmatpush1.msra.mxu0 0.0
        %848 = vmatprep.subr.mxu0 0.0
        %849 = vmatpush1.msra.mxu0 0.0
        %850 = vmatprep.subr.mxu0 0.0
        %851 = vmatpush1.msra.mxu0 0.0
        %852 = vmatprep.subr.mxu0 0.0
        %853 = vmatpush1.msra.mxu0 0.0
        %854 = vmatprep.subr.mxu0 0.0
        %855 = vmatpush1.msra.mxu0 0.0
        %856 = vmatprep.subr.mxu0 0.0
        %857 = vmatpush1.msra.mxu0 0.0
        %858 = vmatprep.subr.mxu0 0.0
        %859 = vmatpush1.msra.mxu0 0.0
        %860 = vmatprep.subr.mxu0 0.0
        %861 = vmatpush1.msra.mxu0 0.0
        %862 = vmatprep.subr.mxu0 0.0
        %863 = vmatpush1.msra.mxu0 0.0
        %864 = vmatprep.subr.mxu0 0.0
        %865 = vmatpush1.msra.mxu0 0.0
        %866 = vmatprep.subr.mxu0 0.0
        %867 = vmatpush1.msra.mxu0 0.0
        %868 = vmatprep.subr.mxu0 0.0
        %869 = vmatpush1.msra.mxu0 0.0
        %870 = vmatprep.subr.mxu0 0.0
        %871 = vmatpush1.msra.mxu0 0.0
        %872 = vmatprep.subr.mxu0 0.0
        %873 = vmatpush1.msra.mxu0 0.0
        %874 = vmatprep.subr.mxu0 0.0
        %875 = vmatpush1.msra.mxu0 0.0
        %876 = vmatprep.subr.mxu0 0.0
        %877 = vmatpush1.msra.mxu0 0.0
        %878 = vmatprep.mubr.f32.mxu0 0.0
        %v879 = vand.u32 %v398, 4294901760
        %880 = vmatmul.mubr.f32.gmra.mrb[0].mxu0 %v879
        %v881 = vpop.f32.mrb[0].mxu0
        %v882 = vadd.f32 %v807, %v881
        %v883 = vpop.f32.mrb[0].mxu0
        %884 = vdwg.mxu0
        %v886 = vcombine.high %v882, %v882
        %v888 = vunpack.c.l.s4 1966171168
        %v889 = vunpack.c.0.s8 %v888
        %v890 = vlaneseq
        %v891 = vshrl.u32 %v890, 7
        %v892 = vsub.s32 %v889, %v891
        %v893 = vrot.slane %v882, %v892
        %v895 = vunpack.c.l.s4 1966171168
        %v896 = vunpack.c.0.s8 %v895
        %v897 = vlaneseq
        %v898 = vshrl.u32 %v897, 7
        %v899 = vsub.s32 %v896, %v898
        %v900 = vrot.slane %v886, %v899
        %v901 = vcombine.high %v893, %v893
        %v902 = vcombine.high %v900, %v900
        %v904 = vunpack.c.l.s4 1966171168
        %v905 = vunpack.c.0.s8 %v904
        %v906 = vlaneseq
        %v907 = vshrl.u32 %v906, 7
        %v908 = vsub.s32 %v905, %v907
        %v909 = vrot.slane %v893, %v908
        %v911 = vunpack.c.l.s4 1966171168
        %v912 = vunpack.c.0.s8 %v911
        %v913 = vlaneseq
        %v914 = vshrl.u32 %v913, 7
        %v915 = vsub.s32 %v912, %v914
        %v916 = vrot.slane %v900, %v915
        %v918 = vunpack.c.l.s4 1966171168
        %v919 = vunpack.c.0.s8 %v918
        %v920 = vlaneseq
        %v921 = vshrl.u32 %v920, 7
        %v922 = vsub.s32 %v919, %v921
        %v923 = vrot.slane %v901, %v922
        %v925 = vunpack.c.l.s4 1966171168
        %v926 = vunpack.c.0.s8 %v925
        %v927 = vlaneseq
        %v928 = vshrl.u32 %v927, 7
        %v929 = vsub.s32 %v926, %v928
        %v930 = vrot.slane %v902, %v929
        %v931 = vcombine.high %v909, %v909
        %v932 = vcombine.high %v916, %v916
        %v933 = vcombine.high %v923, %v923
        %v934 = vcombine.high %v930, %v930
        %v935 = vlaneseq
        %v936 = vshrl.u32 %v935, 7
        %v937 = vsub.s32 0, %v936
        %v938 = vrot.slane %v909, %v937
        %v939 = vlaneseq
        %v940 = vshrl.u32 %v939, 7
        %v941 = vsub.s32 0, %v940
        %v942 = vrot.slane %v923, %v941
        %v943 = vlaneseq
        %v944 = vshrl.u32 %v943, 7
        %v945 = vsub.s32 0, %v944
        %v946 = vrot.slane %v931, %v945
        %v947 = vlaneseq
        %v948 = vshrl.u32 %v947, 7
        %v949 = vsub.s32 0, %v948
        %v950 = vrot.slane %v933, %v949
        %v951 = vlaneseq
        %v952 = vshrl.u32 %v951, 7
        %v953 = vsub.s32 0, %v952
        %v954 = vrot.slane %v916, %v953
        %v955 = vlaneseq
        %v956 = vshrl.u32 %v955, 7
        %v957 = vsub.s32 0, %v956
        %v958 = vrot.slane %v930, %v957
        %v959 = vlaneseq
        %v960 = vshrl.u32 %v959, 7
        %v961 = vsub.s32 0, %v960
        %v962 = vrot.slane %v932, %v961
        %v963 = vlaneseq
        %v964 = vshrl.u32 %v963, 7
        %v965 = vsub.s32 0, %v964
        %v966 = vrot.slane %v934, %v965
        %v975 = vmul.f32 %v383, %v938
        %v976 = vmul.f32 %v384, %v942
        %v977 = vmul.f32 %v385, %v946
        %v978 = vmul.f32 %v386, %v950
        %v979 = vmul.f32 %v387, %v954
        %v980 = vmul.f32 %v388, %v958
        %v981 = vmul.f32 %v389, %v962
        %v982 = vmul.f32 %v390, %v966
        %v983 = vsel %vm396, %v975, 0.0
        %984 = vadd.xlane.f32.xlu0 %v983
        %v985 = vpop.xlane.xlu0 %984
        %v986 = vsel %vm396, %v976, 0.0
        %987 = vadd.xlane.f32.xlu0 %v986
        %v988 = vpop.xlane.xlu0 %987
        %v989 = vsel %vm396, %v977, 0.0
        %990 = vadd.xlane.f32.xlu0 %v989
        %v991 = vpop.xlane.xlu0 %990
        %v992 = vsel %vm396, %v978, 0.0
        %993 = vadd.xlane.f32.xlu0 %v992
        %v994 = vpop.xlane.xlu0 %993
        %v995 = vsel %vm396, %v979, 0.0
        %996 = vadd.xlane.f32.xlu0 %v995
        %v997 = vpop.xlane.xlu0 %996
        %v998 = vsel %vm396, %v980, 0.0
        %999 = vadd.xlane.f32.xlu0 %v998
        %v1000 = vpop.xlane.xlu0 %999
        %v1001 = vsel %vm396, %v981, 0.0
        %1002 = vadd.xlane.f32.xlu0 %v1001
        %v1003 = vpop.xlane.xlu0 %1002
        %v1004 = vsel %vm396, %v982, 0.0
        %1005 = vadd.xlane.f32.xlu0 %v1004
        %v1006 = vpop.xlane.xlu0 %1005
        %v1007 = vlaneseq
        %v1008 = vand.u32 %v1007, 127
        %1009 = vset.pattern.permute.xlu0 0
        %1010 = vperm.xlu0 %1009, %v391
        %v1011 = vpop.permute.xlu0 %1010
        %vm1012 = vcmp.lt.s32.totalorder %v1008, %v1011
        %v1013 = vsel %vm1012, 1, 0
        %v1014 = vcvt.s32.f32 %v1013
        %v1023 = vlaneseq
        %v1024 = vshrl.u32 %v1023, 7
        %v1025 = vsub.s32 %v1008, %v1024
        %v1026 = vrot.slane %v985, %v1025
        %v1027 = vlaneseq
        %v1028 = vshrl.u32 %v1027, 7
        %v1029 = vsub.s32 %v1008, %v1028
        %v1030 = vrot.slane %v988, %v1029
        %v1031 = vlaneseq
        %v1032 = vshrl.u32 %v1031, 7
        %v1033 = vsub.s32 %v1008, %v1032
        %v1034 = vrot.slane %v991, %v1033
        %v1035 = vlaneseq
        %v1036 = vshrl.u32 %v1035, 7
        %v1037 = vsub.s32 %v1008, %v1036
        %v1038 = vrot.slane %v994, %v1037
        %v1039 = vlaneseq
        %v1040 = vshrl.u32 %v1039, 7
        %v1041 = vsub.s32 %v1008, %v1040
        %v1042 = vrot.slane %v997, %v1041
        %v1043 = vlaneseq
        %v1044 = vshrl.u32 %v1043, 7
        %v1045 = vsub.s32 %v1008, %v1044
        %v1046 = vrot.slane %v1000, %v1045
        %v1047 = vlaneseq
        %v1048 = vshrl.u32 %v1047, 7
        %v1049 = vsub.s32 %v1008, %v1048
        %v1050 = vrot.slane %v1003, %v1049
        %v1051 = vlaneseq
        %v1052 = vshrl.u32 %v1051, 7
        %v1053 = vsub.s32 %v1008, %v1052
        %v1054 = vrot.slane %v1006, %v1053
        %vm1055 = vcmask 1041409
        %v1056 = vsel %vm1055, %v1030, %v1026
        %vm1057 = vcmask 1042434
        %v1058 = vsel %vm1057, %v1034, %v1056
        %vm1059 = vcmask 1043459
        %v1060 = vsel %vm1059, %v1038, %v1058
        %vm1061 = vcmask 1044484
        %v1062 = vsel %vm1061, %v1042, %v1060
        %vm1063 = vcmask 1045509
        %v1064 = vsel %vm1063, %v1046, %v1062
        %vm1065 = vcmask 1046534
        %v1066 = vsel %vm1065, %v1050, %v1064
        %vm1067 = vcmask 1047559
        %v1068 = vsel %vm1067, %v1054, %v1066
        %v1070 = vmul.f32 %v1014, %v1068
        %vm1071 = vcmp.eq.f32.partialorder %v1070, 0.0
        %v1072 = vsel %vm1071, -1e+10, %v1070
        %vm1073 = vcmask 64512
        %v1074 = vsel %vm1073, %v1072, -inf
        %1075 = vmax.xlane.f32.xlu0 %v1074
        %v1076 = vpop.xlane.xlu0 %1075
        %v1077 = vsub.f32 %v1072, %v1076
        %v1078 = vmul.f32 %v1077, 1.442695
        %v1079 = vpow.pop %v1078
        %v1080 = vsel %vm1073, %v1079, 0.0
        %1081 = vadd.xlane.f32.xlu0 %v1080
        %v1082 = vpop.xlane.xlu0 %1081
        %v1083 = vrcp.pop %v1082
        %v1084 = vmul.f32 %v1079, %v1083
        %v1085 = vlaneseq
        %v1086 = vshrl.u32 %v1085, 7
        %v1087 = vsub.s32 0, %v1086
        %v1088 = vrot.slane %v1084, %v1087
        %1090 = vbcast.lane.b32.xlu0 %v1088, 256
        %v1091 = vpop.permute.xlu0 %1090
        %v1092 = vlaneseq
        %v1093 = vshrl.u32 %v1092, 7
        %v1094 = vsub.s32 1, %v1093
        %v1095 = vrot.slane %v1084, %v1094
        %1097 = vbcast.lane.b32.xlu0 %v1095, 256
        %v1098 = vpop.permute.xlu0 %1097
        %v1099 = vlaneseq
        %v1100 = vshrl.u32 %v1099, 7
        %v1101 = vsub.s32 2, %v1100
        %v1102 = vrot.slane %v1084, %v1101
        %1104 = vbcast.lane.b32.xlu0 %v1102, 256
        %v1105 = vpop.permute.xlu0 %1104
        %v1106 = vlaneseq
        %v1107 = vshrl.u32 %v1106, 7
        %v1108 = vsub.s32 3, %v1107
        %v1109 = vrot.slane %v1084, %v1108
        %1111 = vbcast.lane.b32.xlu0 %v1109, 256
        %v1112 = vpop.permute.xlu0 %1111
        %v1113 = vlaneseq
        %v1114 = vshrl.u32 %v1113, 7
        %v1115 = vsub.s32 4, %v1114
        %v1116 = vrot.slane %v1084, %v1115
        %1118 = vbcast.lane.b32.xlu0 %v1116, 256
        %v1119 = vpop.permute.xlu0 %1118
        %v1120 = vlaneseq
        %v1121 = vshrl.u32 %v1120, 7
        %v1122 = vsub.s32 5, %v1121
        %v1123 = vrot.slane %v1084, %v1122
        %1125 = vbcast.lane.b32.xlu0 %v1123, 256
        %v1126 = vpop.permute.xlu0 %1125
        %v1127 = vlaneseq
        %v1128 = vshrl.u32 %v1127, 7
        %v1129 = vsub.s32 6, %v1128
        %v1130 = vrot.slane %v1084, %v1129
        %1132 = vbcast.lane.b32.xlu0 %v1130, 256
        %v1133 = vpop.permute.xlu0 %1132
        %v1134 = vlaneseq
        %v1135 = vshrl.u32 %v1134, 7
        %v1136 = vsub.s32 7, %v1135
        %v1137 = vrot.slane %v1084, %v1136
        %1139 = vbcast.lane.b32.xlu0 %v1137, 256
        %v1140 = vpop.permute.xlu0 %1139
        %v1141 = vmul.f32 %v1091, %v383
        %v1142 = vmul.f32 %v1098, %v384
        %v1143 = vmul.f32 %v1105, %v385
        %v1144 = vmul.f32 %v1112, %v386
        %v1145 = vmul.f32 %v1119, %v387
        %v1146 = vmul.f32 %v1126, %v388
        %v1147 = vmul.f32 %v1133, %v389
        %v1148 = vmul.f32 %v1140, %v390
        %v1149 = vsel %vm396, %v1141, 0.0
        %v1150 = vrot.slane %v1149, 4
        %v1151 = vadd.f32 %v1149, %v1150
        %v1152 = vrot.slane %v1151, 2
        %v1153 = vadd.f32 %v1151, %v1152
        %v1154 = vrot.slane %v1153, 1
        %v1155 = vadd.f32 %v1153, %v1154
        %v1156 = vsel %vm396, %v1142, 0.0
        %v1157 = vrot.slane %v1156, 4
        %v1158 = vadd.f32 %v1156, %v1157
        %v1159 = vrot.slane %v1158, 2
        %v1160 = vadd.f32 %v1158, %v1159
        %v1161 = vrot.slane %v1160, 1
        %v1162 = vadd.f32 %v1160, %v1161
        %v1163 = vsel %vm396, %v1143, 0.0
        %v1164 = vrot.slane %v1163, 4
        %v1165 = vadd.f32 %v1163, %v1164
        %v1166 = vrot.slane %v1165, 2
        %v1167 = vadd.f32 %v1165, %v1166
        %v1168 = vrot.slane %v1167, 1
        %v1169 = vadd.f32 %v1167, %v1168
        %v1170 = vsel %vm396, %v1144, 0.0
        %v1171 = vrot.slane %v1170, 4
        %v1172 = vadd.f32 %v1170, %v1171
        %v1173 = vrot.slane %v1172, 2
        %v1174 = vadd.f32 %v1172, %v1173
        %v1175 = vrot.slane %v1174, 1
        %v1176 = vadd.f32 %v1174, %v1175
        %v1177 = vsel %vm396, %v1145, 0.0
        %v1178 = vrot.slane %v1177, 4
        %v1179 = vadd.f32 %v1177, %v1178
        %v1180 = vrot.slane %v1179, 2
        %v1181 = vadd.f32 %v1179, %v1180
        %v1182 = vrot.slane %v1181, 1
        %v1183 = vadd.f32 %v1181, %v1182
        %v1184 = vsel %vm396, %v1146, 0.0
        %v1185 = vrot.slane %v1184, 4
        %v1186 = vadd.f32 %v1184, %v1185
        %v1187 = vrot.slane %v1186, 2
        %v1188 = vadd.f32 %v1186, %v1187
        %v1189 = vrot.slane %v1188, 1
        %v1190 = vadd.f32 %v1188, %v1189
        %v1191 = vsel %vm396, %v1147, 0.0
        %v1192 = vrot.slane %v1191, 4
        %v1193 = vadd.f32 %v1191, %v1192
        %v1194 = vrot.slane %v1193, 2
        %v1195 = vadd.f32 %v1193, %v1194
        %v1196 = vrot.slane %v1195, 1
        %v1197 = vadd.f32 %v1195, %v1196
        %v1198 = vsel %vm396, %v1148, 0.0
        %v1199 = vrot.slane %v1198, 4
        %v1200 = vadd.f32 %v1198, %v1199
        %v1201 = vrot.slane %v1200, 2
        %v1202 = vadd.f32 %v1200, %v1201
        %v1203 = vrot.slane %v1202, 1
        %v1204 = vadd.f32 %v1202, %v1203
        %v1205 = vld [vmem:[#allocation10] sm:$0xff]
        %v1206 = vld [vmem:[#allocation10 + $0x8] sm:$0xff]
        %v1207 = vld [vmem:[#allocation10 + $0x10] sm:$0xff]
        %v1208 = vld [vmem:[#allocation10 + $0x18] sm:$0xff]
        %v1209 = vld [vmem:[#allocation10 + $0x20] sm:$0xff]
        %v1210 = vld [vmem:[#allocation10 + $0x28] sm:$0xff]
        %v1211 = vld [vmem:[#allocation10 + $0x30] sm:$0xff]
        %v1212 = vld [vmem:[#allocation10 + $0x38] sm:$0xff]
        %1213 = vmatprep.subr.mxu0 0.0
        %v1214 = vand.u32 %v1209, 4294901760
        %1215 = vmatpush1.msra.mxu0 %v1214
        %1216 = vmatprep.subr.mxu0 0.0
        %v1217 = vand.u32 %v1210, 4294901760
        %1218 = vmatpush1.msra.mxu0 %v1217
        %1219 = vmatprep.subr.mxu0 0.0
        %v1220 = vand.u32 %v1211, 4294901760
        %1221 = vmatpush1.msra.mxu0 %v1220
        %1222 = vmatprep.subr.mxu0 0.0
        %v1223 = vand.u32 %v1212, 4294901760
        %1224 = vmatpush1.msra.mxu0 %v1223
        %1225 = vmatprep.subr.mxu0 0.0
        %1226 = vmatpush1.msra.mxu0 0.0
        %1227 = vmatprep.subr.mxu0 0.0
        %1228 = vmatpush1.msra.mxu0 0.0
        %1229 = vmatprep.subr.mxu0 0.0
        %1230 = vmatpush1.msra.mxu0 0.0
        %1231 = vmatprep.subr.mxu0 0.0
        %1232 = vmatpush1.msra.mxu0 0.0
        %1233 = vmatprep.subr.mxu0 0.0
        %1234 = vmatpush1.msra.mxu0 0.0
        %1235 = vmatprep.subr.mxu0 0.0
        %1236 = vmatpush1.msra.mxu0 0.0
        %1237 = vmatprep.subr.mxu0 0.0
        %1238 = vmatpush1.msra.mxu0 0.0
        %1239 = vmatprep.subr.mxu0 0.0
        %1240 = vmatpush1.msra.mxu0 0.0
        %1241 = vmatprep.subr.mxu0 0.0
        %1242 = vmatpush1.msra.mxu0 0.0
        %1243 = vmatprep.subr.mxu0 0.0
        %1244 = vmatpush1.msra.mxu0 0.0
        %1245 = vmatprep.subr.mxu0 0.0
        %1246 = vmatpush1.msra.mxu0 0.0
        %1247 = vmatprep.subr.mxu0 0.0
        %1248 = vmatpush1.msra.mxu0 0.0
        %1249 = vmatprep.subr.mxu0 0.0
        %1250 = vmatpush1.msra.mxu0 0.0
        %1251 = vmatprep.subr.mxu0 0.0
        %1252 = vmatpush1.msra.mxu0 0.0
        %1253 = vmatprep.subr.mxu0 0.0
        %1254 = vmatpush1.msra.mxu0 0.0
        %1255 = vmatprep.subr.mxu0 0.0
        %1256 = vmatpush1.msra.mxu0 0.0
        %1257 = vmatprep.subr.mxu0 0.0
        %1258 = vmatpush1.msra.mxu0 0.0
        %1259 = vmatprep.subr.mxu0 0.0
        %1260 = vmatpush1.msra.mxu0 0.0
        %1261 = vmatprep.subr.mxu0 0.0
        %1262 = vmatpush1.msra.mxu0 0.0
        %1263 = vmatprep.subr.mxu0 0.0
        %1264 = vmatpush1.msra.mxu0 0.0
        %1265 = vmatprep.subr.mxu0 0.0
        %1266 = vmatpush1.msra.mxu0 0.0
        %1267 = vmatprep.subr.mxu0 0.0
        %1268 = vmatpush1.msra.mxu0 0.0
        %1269 = vmatprep.subr.mxu0 0.0
        %1270 = vmatpush1.msra.mxu0 0.0
        %1271 = vmatprep.subr.mxu0 0.0
        %1272 = vmatpush1.msra.mxu0 0.0
        %1273 = vmatprep.subr.mxu0 0.0
        %1274 = vmatpush1.msra.mxu0 0.0
        %1275 = vmatprep.subr.mxu0 0.0
        %1276 = vmatpush1.msra.mxu0 0.0
        %1277 = vmatprep.subr.mxu0 0.0
        %1278 = vmatpush1.msra.mxu0 0.0
        %1279 = vmatprep.subr.mxu0 0.0
        %1280 = vmatpush1.msra.mxu0 0.0
        %1281 = vmatprep.mubr.f32.mxu0 0.0
        %v1282 = vand.u32 %v398, 4294901760
        %v1283 = vsub.f32 %v398, %v1282
        %v1284 = vand.u32 %v1283, 4294901760
        %v1285 = vsub.f32 %v1283, %v1284
        %v1286 = vand.u32 %v1285, 4294901760
        %1287 = vmatmul.mubr.f32.gmra.mrb[0].mxu0 %v1286
        %v1288 = vpop.f32.mrb[0].mxu0
        %v1289 = vadd.f32 0.0, %v1288
        %v1290 = vpop.f32.mrb[0].mxu0
        %1291 = vdwg.mxu0
        %1292 = vmatprep.subr.mxu0 0.0
        %v1293 = vand.u32 %v1209, 4294901760
        %v1294 = vsub.f32 %v1209, %v1293
        %v1295 = vand.u32 %v1294, 4294901760
        %v1296 = vsub.f32 %v1294, %v1295
        %v1297 = vand.u32 %v1296, 4294901760
        %1298 = vmatpush1.msra.mxu0 %v1297
        %1299 = vmatprep.subr.mxu0 0.0
        %v1300 = vand.u32 %v1210, 4294901760
        %v1301 = vsub.f32 %v1210, %v1300
        %v1302 = vand.u32 %v1301, 4294901760
        %v1303 = vsub.f32 %v1301, %v1302
        %v1304 = vand.u32 %v1303, 4294901760
        %1305 = vmatpush1.msra.mxu0 %v1304
        %1306 = vmatprep.subr.mxu0 0.0
        %v1307 = vand.u32 %v1211, 4294901760
        %v1308 = vsub.f32 %v1211, %v1307
        %v1309 = vand.u32 %v1308, 4294901760
        %v1310 = vsub.f32 %v1308, %v1309
        %v1311 = vand.u32 %v1310, 4294901760
        %1312 = vmatpush1.msra.mxu0 %v1311
        %1313 = vmatprep.subr.mxu0 0.0
        %v1314 = vand.u32 %v1212, 4294901760
        %v1315 = vsub.f32 %v1212, %v1314
        %v1316 = vand.u32 %v1315, 4294901760
        %v1317 = vsub.f32 %v1315, %v1316
        %v1318 = vand.u32 %v1317, 4294901760
        %1319 = vmatpush1.msra.mxu0 %v1318
        %1320 = vmatprep.subr.mxu0 0.0
        %1321 = vmatpush1.msra.mxu0 0.0
        %1322 = vmatprep.subr.mxu0 0.0
        %1323 = vmatpush1.msra.mxu0 0.0
        %1324 = vmatprep.subr.mxu0 0.0
        %1325 = vmatpush1.msra.mxu0 0.0
        %1326 = vmatprep.subr.mxu0 0.0
        %1327 = vmatpush1.msra.mxu0 0.0
        %1328 = vmatprep.subr.mxu0 0.0
        %1329 = vmatpush1.msra.mxu0 0.0
        %1330 = vmatprep.subr.mxu0 0.0
        %1331 = vmatpush1.msra.mxu0 0.0
        %1332 = vmatprep.subr.mxu0 0.0
        %1333 = vmatpush1.msra.mxu0 0.0
        %1334 = vmatprep.subr.mxu0 0.0
        %1335 = vmatpush1.msra.mxu0 0.0
        %1336 = vmatprep.subr.mxu0 0.0
        %1337 = vmatpush1.msra.mxu0 0.0
        %1338 = vmatprep.subr.mxu0 0.0
        %1339 = vmatpush1.msra.mxu0 0.0
        %1340 = vmatprep.subr.mxu0 0.0
        %1341 = vmatpush1.msra.mxu0 0.0
        %1342 = vmatprep.subr.mxu0 0.0
        %1343 = vmatpush1.msra.mxu0 0.0
        %1344 = vmatprep.subr.mxu0 0.0
        %1345 = vmatpush1.msra.mxu0 0.0
        %1346 = vmatprep.subr.mxu0 0.0
        %1347 = vmatpush1.msra.mxu0 0.0
        %1348 = vmatprep.subr.mxu0 0.0
        %1349 = vmatpush1.msra.mxu0 0.0
        %1350 = vmatprep.subr.mxu0 0.0
        %1351 = vmatpush1.msra.mxu0 0.0
        %1352 = vmatprep.subr.mxu0 0.0
        %1353 = vmatpush1.msra.mxu0 0.0
        %1354 = vmatprep.subr.mxu0 0.0
        %1355 = vmatpush1.msra.mxu0 0.0
        %1356 = vmatprep.subr.mxu0 0.0
        %1357 = vmatpush1.msra.mxu0 0.0
        %1358 = vmatprep.subr.mxu0 0.0
        %1359 = vmatpush1.msra.mxu0 0.0
        %1360 = vmatprep.subr.mxu0 0.0
        %1361 = vmatpush1.msra.mxu0 0.0
        %1362 = vmatprep.subr.mxu0 0.0
        %1363 = vmatpush1.msra.mxu0 0.0
        %1364 = vmatprep.subr.mxu0 0.0
        %1365 = vmatpush1.msra.mxu0 0.0
        %1366 = vmatprep.subr.mxu0 0.0
        %1367 = vmatpush1.msra.mxu0 0.0
        %1368 = vmatprep.subr.mxu0 0.0
        %1369 = vmatpush1.msra.mxu0 0.0
        %1370 = vmatprep.subr.mxu0 0.0
        %1371 = vmatpush1.msra.mxu0 0.0
        %1372 = vmatprep.subr.mxu0 0.0
        %1373 = vmatpush1.msra.mxu0 0.0
        %1374 = vmatprep.subr.mxu0 0.0
        %1375 = vmatpush1.msra.mxu0 0.0
        %1376 = vmatprep.mubr.f32.mxu0 0.0
        %v1377 = vand.u32 %v398, 4294901760
        %1378 = vmatmul.mubr.f32.gmra.mrb[0].mxu0 %v1377
        %v1379 = vpop.f32.mrb[0].mxu0
        %v1380 = vadd.f32 %v1289, %v1379
        %v1381 = vpop.f32.mrb[0].mxu0
        %1382 = vdwg.mxu0
        %1383 = vmatprep.subr.mxu0 0.0
        %v1384 = vand.u32 %v1209, 4294901760
        %v1385 = vsub.f32 %v1209, %v1384
        %1386 = vmatpush1.msra.mxu0 %v1385
        %1387 = vmatprep.subr.mxu0 0.0
        %v1388 = vand.u32 %v1210, 4294901760
        %v1389 = vsub.f32 %v1210, %v1388
        %1390 = vmatpush1.msra.mxu0 %v1389
        %1391 = vmatprep.subr.mxu0 0.0
        %v1392 = vand.u32 %v1211, 4294901760
        %v1393 = vsub.f32 %v1211, %v1392
        %1394 = vmatpush1.msra.mxu0 %v1393
        %1395 = vmatprep.subr.mxu0 0.0
        %v1396 = vand.u32 %v1212, 4294901760
        %v1397 = vsub.f32 %v1212, %v1396
        %1398 = vmatpush1.msra.mxu0 %v1397
        %1399 = vmatprep.subr.mxu0 0.0
        %1400 = vmatpush1.msra.mxu0 0.0
        %1401 = vmatprep.subr.mxu0 0.0
        %1402 = vmatpush1.msra.mxu0 0.0
        %1403 = vmatprep.subr.mxu0 0.0
        %1404 = vmatpush1.msra.mxu0 0.0
        %1405 = vmatprep.subr.mxu0 0.0
        %1406 = vmatpush1.msra.mxu0 0.0
        %1407 = vmatprep.subr.mxu0 0.0
        %1408 = vmatpush1.msra.mxu0 0.0
        %1409 = vmatprep.subr.mxu0 0.0
        %1410 = vmatpush1.msra.mxu0 0.0
        %1411 = vmatprep.subr.mxu0 0.0
        %1412 = vmatpush1.msra.mxu0 0.0
        %1413 = vmatprep.subr.mxu0 0.0
        %1414 = vmatpush1.msra.mxu0 0.0
        %1415 = vmatprep.subr.mxu0 0.0
        %1416 = vmatpush1.msra.mxu0 0.0
        %1417 = vmatprep.subr.mxu0 0.0
        %1418 = vmatpush1.msra.mxu0 0.0
        %1419 = vmatprep.subr.mxu0 0.0
        %1420 = vmatpush1.msra.mxu0 0.0
        %1421 = vmatprep.subr.mxu0 0.0
        %1422 = vmatpush1.msra.mxu0 0.0
        %1423 = vmatprep.subr.mxu0 0.0
        %1424 = vmatpush1.msra.mxu0 0.0
        %1425 = vmatprep.subr.mxu0 0.0
        %1426 = vmatpush1.msra.mxu0 0.0
        %1427 = vmatprep.subr.mxu0 0.0
        %1428 = vmatpush1.msra.mxu0 0.0
        %1429 = vmatprep.subr.mxu0 0.0
        %1430 = vmatpush1.msra.mxu0 0.0
        %1431 = vmatprep.subr.mxu0 0.0
        %1432 = vmatpush1.msra.mxu0 0.0
        %1433 = vmatprep.subr.mxu0 0.0
        %1434 = vmatpush1.msra.mxu0 0.0
        %1435 = vmatprep.subr.mxu0 0.0
        %1436 = vmatpush1.msra.mxu0 0.0
        %1437 = vmatprep.subr.mxu0 0.0
        %1438 = vmatpush1.msra.mxu0 0.0
        %1439 = vmatprep.subr.mxu0 0.0
        %1440 = vmatpush1.msra.mxu0 0.0
        %1441 = vmatprep.subr.mxu0 0.0
        %1442 = vmatpush1.msra.mxu0 0.0
        %1443 = vmatprep.subr.mxu0 0.0
        %1444 = vmatpush1.msra.mxu0 0.0
        %1445 = vmatprep.subr.mxu0 0.0
        %1446 = vmatpush1.msra.mxu0 0.0
        %1447 = vmatprep.subr.mxu0 0.0
        %1448 = vmatpush1.msra.mxu0 0.0
        %1449 = vmatprep.subr.mxu0 0.0
        %1450 = vmatpush1.msra.mxu0 0.0
        %1451 = vmatprep.subr.mxu0 0.0
        %1452 = vmatpush1.msra.mxu0 0.0
        %1453 = vmatprep.subr.mxu0 0.0
        %1454 = vmatpush1.msra.mxu0 0.0
        %1455 = vmatprep.mubr.f32.mxu0 0.0
        %v1456 = vand.u32 %v398, 4294901760
        %v1457 = vsub.f32 %v398, %v1456
        %1458 = vmatmul.mubr.f32.gmra.mrb[0].mxu0 %v1457
        %v1459 = vpop.f32.mrb[0].mxu0
        %v1460 = vadd.f32 %v1380, %v1459
        %v1461 = vpop.f32.mrb[0].mxu0
        %1462 = vdwg.mxu0
        %1463 = vmatprep.subr.mxu0 0.0
        %v1464 = vand.u32 %v1209, 4294901760
        %1465 = vmatpush1.msra.mxu0 %v1464
        %1466 = vmatprep.subr.mxu0 0.0
        %v1467 = vand.u32 %v1210, 4294901760
        %1468 = vmatpush1.msra.mxu0 %v1467
        %1469 = vmatprep.subr.mxu0 0.0
        %v1470 = vand.u32 %v1211, 4294901760
        %1471 = vmatpush1.msra.mxu0 %v1470
        %1472 = vmatprep.subr.mxu0 0.0
        %v1473 = vand.u32 %v1212, 4294901760
        %1474 = vmatpush1.msra.mxu0 %v1473
        %1475 = vmatprep.subr.mxu0 0.0
        %1476 = vmatpush1.msra.mxu0 0.0
        %1477 = vmatprep.subr.mxu0 0.0
        %1478 = vmatpush1.msra.mxu0 0.0
        %1479 = vmatprep.subr.mxu0 0.0
        %1480 = vmatpush1.msra.mxu0 0.0
        %1481 = vmatprep.subr.mxu0 0.0
        %1482 = vmatpush1.msra.mxu0 0.0
        %1483 = vmatprep.subr.mxu0 0.0
        %1484 = vmatpush1.msra.mxu0 0.0
        %1485 = vmatprep.subr.mxu0 0.0
        %1486 = vmatpush1.msra.mxu0 0.0
        %1487 = vmatprep.subr.mxu0 0.0
        %1488 = vmatpush1.msra.mxu0 0.0
        %1489 = vmatprep.subr.mxu0 0.0
        %1490 = vmatpush1.msra.mxu0 0.0
        %1491 = vmatprep.subr.mxu0 0.0
        %1492 = vmatpush1.msra.mxu0 0.0
        %1493 = vmatprep.subr.mxu0 0.0
        %1494 = vmatpush1.msra.mxu0 0.0
        %1495 = vmatprep.subr.mxu0 0.0
        %1496 = vmatpush1.msra.mxu0 0.0
        %1497 = vmatprep.subr.mxu0 0.0
        %1498 = vmatpush1.msra.mxu0 0.0
        %1499 = vmatprep.subr.mxu0 0.0
        %1500 = vmatpush1.msra.mxu0 0.0
        %1501 = vmatprep.subr.mxu0 0.0
        %1502 = vmatpush1.msra.mxu0 0.0
        %1503 = vmatprep.subr.mxu0 0.0
        %1504 = vmatpush1.msra.mxu0 0.0
        %1505 = vmatprep.subr.mxu0 0.0
        %1506 = vmatpush1.msra.mxu0 0.0
        %1507 = vmatprep.subr.mxu0 0.0
        %1508 = vmatpush1.msra.mxu0 0.0
        %1509 = vmatprep.subr.mxu0 0.0
        %1510 = vmatpush1.msra.mxu0 0.0
        %1511 = vmatprep.subr.mxu0 0.0
        %1512 = vmatpush1.msra.mxu0 0.0
        %1513 = vmatprep.subr.mxu0 0.0
        %1514 = vmatpush1.msra.mxu0 0.0
        %1515 = vmatprep.subr.mxu0 0.0
        %1516 = vmatpush1.msra.mxu0 0.0
        %1517 = vmatprep.subr.mxu0 0.0
        %1518 = vmatpush1.msra.mxu0 0.0
        %1519 = vmatprep.subr.mxu0 0.0
        %1520 = vmatpush1.msra.mxu0 0.0
        %1521 = vmatprep.subr.mxu0 0.0
        %1522 = vmatpush1.msra.mxu0 0.0
        %1523 = vmatprep.subr.mxu0 0.0
        %1524 = vmatpush1.msra.mxu0 0.0
        %1525 = vmatprep.subr.mxu0 0.0
        %1526 = vmatpush1.msra.mxu0 0.0
        %1527 = vmatprep.subr.mxu0 0.0
        %1528 = vmatpush1.msra.mxu0 0.0
        %1529 = vmatprep.subr.mxu0 0.0
        %1530 = vmatpush1.msra.mxu0 0.0
        %1531 = vmatprep.mubr.f32.mxu0 0.0
        %v1532 = vand.u32 %v398, 4294901760
        %v1533 = vsub.f32 %v398, %v1532
        %v1534 = vand.u32 %v1533, 4294901760
        %1535 = vmatmul.mubr.f32.gmra.mrb[0].mxu0 %v1534
        %v1536 = vpop.f32.mrb[0].mxu0
        %v1537 = vadd.f32 %v1460, %v1536
        %v1538 = vpop.f32.mrb[0].mxu0
        %1539 = vdwg.mxu0
        %1540 = vmatprep.subr.mxu0 0.0
        %v1541 = vand.u32 %v1209, 4294901760
        %v1542 = vsub.f32 %v1209, %v1541
        %v1543 = vand.u32 %v1542, 4294901760
        %1544 = vmatpush1.msra.mxu0 %v1543
        %1545 = vmatprep.subr.mxu0 0.0
        %v1546 = vand.u32 %v1210, 4294901760
        %v1547 = vsub.f32 %v1210, %v1546
        %v1548 = vand.u32 %v1547, 4294901760
        %1549 = vmatpush1.msra.mxu0 %v1548
        %1550 = vmatprep.subr.mxu0 0.0
        %v1551 = vand.u32 %v1211, 4294901760
        %v1552 = vsub.f32 %v1211, %v1551
        %v1553 = vand.u32 %v1552, 4294901760
        %1554 = vmatpush1.msra.mxu0 %v1553
        %1555 = vmatprep.subr.mxu0 0.0
        %v1556 = vand.u32 %v1212, 4294901760
        %v1557 = vsub.f32 %v1212, %v1556
        %v1558 = vand.u32 %v1557, 4294901760
        %1559 = vmatpush1.msra.mxu0 %v1558
        %1560 = vmatprep.subr.mxu0 0.0
        %1561 = vmatpush1.msra.mxu0 0.0
        %1562 = vmatprep.subr.mxu0 0.0
        %1563 = vmatpush1.msra.mxu0 0.0
        %1564 = vmatprep.subr.mxu0 0.0
        %1565 = vmatpush1.msra.mxu0 0.0
        %1566 = vmatprep.subr.mxu0 0.0
        %1567 = vmatpush1.msra.mxu0 0.0
        %1568 = vmatprep.subr.mxu0 0.0
        %1569 = vmatpush1.msra.mxu0 0.0
        %1570 = vmatprep.subr.mxu0 0.0
        %1571 = vmatpush1.msra.mxu0 0.0
        %1572 = vmatprep.subr.mxu0 0.0
        %1573 = vmatpush1.msra.mxu0 0.0
        %1574 = vmatprep.subr.mxu0 0.0
        %1575 = vmatpush1.msra.mxu0 0.0
        %1576 = vmatprep.subr.mxu0 0.0
        %1577 = vmatpush1.msra.mxu0 0.0
        %1578 = vmatprep.subr.mxu0 0.0
        %1579 = vmatpush1.msra.mxu0 0.0
        %1580 = vmatprep.subr.mxu0 0.0
        %1581 = vmatpush1.msra.mxu0 0.0
        %1582 = vmatprep.subr.mxu0 0.0
        %1583 = vmatpush1.msra.mxu0 0.0
        %1584 = vmatprep.subr.mxu0 0.0
        %1585 = vmatpush1.msra.mxu0 0.0
        %1586 = vmatprep.subr.mxu0 0.0
        %1587 = vmatpush1.msra.mxu0 0.0
        %1588 = vmatprep.subr.mxu0 0.0
        %1589 = vmatpush1.msra.mxu0 0.0
        %1590 = vmatprep.subr.mxu0 0.0
        %1591 = vmatpush1.msra.mxu0 0.0
        %1592 = vmatprep.subr.mxu0 0.0
        %1593 = vmatpush1.msra.mxu0 0.0
        %1594 = vmatprep.subr.mxu0 0.0
        %1595 = vmatpush1.msra.mxu0 0.0
        %1596 = vmatprep.subr.mxu0 0.0
        %1597 = vmatpush1.msra.mxu0 0.0
        %1598 = vmatprep.subr.mxu0 0.0
        %1599 = vmatpush1.msra.mxu0 0.0
        %1600 = vmatprep.subr.mxu0 0.0
        %1601 = vmatpush1.msra.mxu0 0.0
        %1602 = vmatprep.subr.mxu0 0.0
        %1603 = vmatpush1.msra.mxu0 0.0
        %1604 = vmatprep.subr.mxu0 0.0
        %1605 = vmatpush1.msra.mxu0 0.0
        %1606 = vmatprep.subr.mxu0 0.0
        %1607 = vmatpush1.msra.mxu0 0.0
        %1608 = vmatprep.subr.mxu0 0.0
        %1609 = vmatpush1.msra.mxu0 0.0
        %1610 = vmatprep.subr.mxu0 0.0
        %1611 = vmatpush1.msra.mxu0 0.0
        %1612 = vmatprep.subr.mxu0 0.0
        %1613 = vmatpush1.msra.mxu0 0.0
        %1614 = vmatprep.subr.mxu0 0.0
        %1615 = vmatpush1.msra.mxu0 0.0
        %1616 = vmatprep.mubr.f32.mxu0 0.0
        %v1617 = vand.u32 %v398, 4294901760
        %1618 = vmatmul.mubr.f32.gmra.mrb[0].mxu0 %v1617
        %v1619 = vpop.f32.mrb[0].mxu0
        %v1620 = vadd.f32 %v1537, %v1619
        %v1621 = vpop.f32.mrb[0].mxu0
        %1622 = vdwg.mxu0
        %1623 = vmatprep.subr.mxu0 0.0
        %v1624 = vand.u32 %v1209, 4294901760
        %1625 = vmatpush1.msra.mxu0 %v1624
        %1626 = vmatprep.subr.mxu0 0.0
        %v1627 = vand.u32 %v1210, 4294901760
        %1628 = vmatpush1.msra.mxu0 %v1627
        %1629 = vmatprep.subr.mxu0 0.0
        %v1630 = vand.u32 %v1211, 4294901760
        %1631 = vmatpush1.msra.mxu0 %v1630
        %1632 = vmatprep.subr.mxu0 0.0
        %v1633 = vand.u32 %v1212, 4294901760
        %1634 = vmatpush1.msra.mxu0 %v1633
        %1635 = vmatprep.subr.mxu0 0.0
        %1636 = vmatpush1.msra.mxu0 0.0
        %1637 = vmatprep.subr.mxu0 0.0
        %1638 = vmatpush1.msra.mxu0 0.0
        %1639 = vmatprep.subr.mxu0 0.0
        %1640 = vmatpush1.msra.mxu0 0.0
        %1641 = vmatprep.subr.mxu0 0.0
        %1642 = vmatpush1.msra.mxu0 0.0
        %1643 = vmatprep.subr.mxu0 0.0
        %1644 = vmatpush1.msra.mxu0 0.0
        %1645 = vmatprep.subr.mxu0 0.0
        %1646 = vmatpush1.msra.mxu0 0.0
        %1647 = vmatprep.subr.mxu0 0.0
        %1648 = vmatpush1.msra.mxu0 0.0
        %1649 = vmatprep.subr.mxu0 0.0
        %1650 = vmatpush1.msra.mxu0 0.0
        %1651 = vmatprep.subr.mxu0 0.0
        %1652 = vmatpush1.msra.mxu0 0.0
        %1653 = vmatprep.subr.mxu0 0.0
        %1654 = vmatpush1.msra.mxu0 0.0
        %1655 = vmatprep.subr.mxu0 0.0
        %1656 = vmatpush1.msra.mxu0 0.0
        %1657 = vmatprep.subr.mxu0 0.0
        %1658 = vmatpush1.msra.mxu0 0.0
        %1659 = vmatprep.subr.mxu0 0.0
        %1660 = vmatpush1.msra.mxu0 0.0
        %1661 = vmatprep.subr.mxu0 0.0
        %1662 = vmatpush1.msra.mxu0 0.0
        %1663 = vmatprep.subr.mxu0 0.0
        %1664 = vmatpush1.msra.mxu0 0.0
        %1665 = vmatprep.subr.mxu0 0.0
        %1666 = vmatpush1.msra.mxu0 0.0
        %1667 = vmatprep.subr.mxu0 0.0
        %1668 = vmatpush1.msra.mxu0 0.0
        %1669 = vmatprep.subr.mxu0 0.0
        %1670 = vmatpush1.msra.mxu0 0.0
        %1671 = vmatprep.subr.mxu0 0.0
        %1672 = vmatpush1.msra.mxu0 0.0
        %1673 = vmatprep.subr.mxu0 0.0
        %1674 = vmatpush1.msra.mxu0 0.0
        %1675 = vmatprep.subr.mxu0 0.0
        %1676 = vmatpush1.msra.mxu0 0.0
        %1677 = vmatprep.subr.mxu0 0.0
        %1678 = vmatpush1.msra.mxu0 0.0
        %1679 = vmatprep.subr.mxu0 0.0
        %1680 = vmatpush1.msra.mxu0 0.0
        %1681 = vmatprep.subr.mxu0 0.0
        %1682 = vmatpush1.msra.mxu0 0.0
        %1683 = vmatprep.subr.mxu0 0.0
        %1684 = vmatpush1.msra.mxu0 0.0
        %1685 = vmatprep.subr.mxu0 0.0
        %1686 = vmatpush1.msra.mxu0 0.0
        %1687 = vmatprep.subr.mxu0 0.0
        %1688 = vmatpush1.msra.mxu0 0.0
        %1689 = vmatprep.subr.mxu0 0.0
        %1690 = vmatpush1.msra.mxu0 0.0
        %1691 = vmatprep.mubr.f32.mxu0 0.0
        %v1692 = vand.u32 %v398, 4294901760
        %1693 = vmatmul.mubr.f32.gmra.mrb[0].mxu0 %v1692
        %v1694 = vpop.f32.mrb[0].mxu0
        %v1695 = vadd.f32 %v1620, %v1694
        %v1696 = vpop.f32.mrb[0].mxu0
        %1697 = vdwg.mxu0
        %v1706 = vsel %vm1055, %v1162, %v1155
        %v1707 = vsel %vm1057, %v1169, %v1706
        %v1708 = vsel %vm1059, %v1176, %v1707
        %v1709 = vsel %vm1061, %v1183, %v1708
        %v1710 = vsel %vm1063, %v1190, %v1709
        %v1711 = vsel %vm1065, %v1197, %v1710
        %v1712 = vsel %vm1067, %v1204, %v1711
        %v1713 = vsel %vm396, %v1712, 0
        %1715 = vmatprep.subr.mxu0 0.0
        %v1716 = vand.u32 %v1205, 4294901760
        %1717 = vmatpush1.msra.mxu0 %v1716
        %1718 = vmatprep.subr.mxu0 0.0
        %v1719 = vand.u32 %v1206, 4294901760
        %1720 = vmatpush1.msra.mxu0 %v1719
        %1721 = vmatprep.subr.mxu0 0.0
        %v1722 = vand.u32 %v1207, 4294901760
        %1723 = vmatpush1.msra.mxu0 %v1722
        %1724 = vmatprep.subr.mxu0 0.0
        %v1725 = vand.u32 %v1208, 4294901760
        %1726 = vmatpush1.msra.mxu0 %v1725
        %1727 = vmatprep.subr.mxu0 0.0
        %1728 = vmatpush1.msra.mxu0 0.0
        %1729 = vmatprep.subr.mxu0 0.0
        %1730 = vmatpush1.msra.mxu0 0.0
        %1731 = vmatprep.subr.mxu0 0.0
        %1732 = vmatpush1.msra.mxu0 0.0
        %1733 = vmatprep.subr.mxu0 0.0
        %1734 = vmatpush1.msra.mxu0 0.0
        %1735 = vmatprep.subr.mxu0 0.0
        %1736 = vmatpush1.msra.mxu0 0.0
        %1737 = vmatprep.subr.mxu0 0.0
        %1738 = vmatpush1.msra.mxu0 0.0
        %1739 = vmatprep.subr.mxu0 0.0
        %1740 = vmatpush1.msra.mxu0 0.0
        %1741 = vmatprep.subr.mxu0 0.0
        %1742 = vmatpush1.msra.mxu0 0.0
        %1743 = vmatprep.subr.mxu0 0.0
        %1744 = vmatpush1.msra.mxu0 0.0
        %1745 = vmatprep.subr.mxu0 0.0
        %1746 = vmatpush1.msra.mxu0 0.0
        %1747 = vmatprep.subr.mxu0 0.0
        %1748 = vmatpush1.msra.mxu0 0.0
        %1749 = vmatprep.subr.mxu0 0.0
        %1750 = vmatpush1.msra.mxu0 0.0
        %1751 = vmatprep.subr.mxu0 0.0
        %1752 = vmatpush1.msra.mxu0 0.0
        %1753 = vmatprep.subr.mxu0 0.0
        %1754 = vmatpush1.msra.mxu0 0.0
        %1755 = vmatprep.subr.mxu0 0.0
        %1756 = vmatpush1.msra.mxu0 0.0
        %1757 = vmatprep.subr.mxu0 0.0
        %1758 = vmatpush1.msra.mxu0 0.0
        %1759 = vmatprep.subr.mxu0 0.0
        %1760 = vmatpush1.msra.mxu0 0.0
        %1761 = vmatprep.subr.mxu0 0.0
        %1762 = vmatpush1.msra.mxu0 0.0
        %1763 = vmatprep.subr.mxu0 0.0
        %1764 = vmatpush1.msra.mxu0 0.0
        %1765 = vmatprep.subr.mxu0 0.0
        %1766 = vmatpush1.msra.mxu0 0.0
        %1767 = vmatprep.subr.mxu0 0.0
        %1768 = vmatpush1.msra.mxu0 0.0
        %1769 = vmatprep.subr.mxu0 0.0
        %1770 = vmatpush1.msra.mxu0 0.0
        %1771 = vmatprep.subr.mxu0 0.0
        %1772 = vmatpush1.msra.mxu0 0.0
        %1773 = vmatprep.subr.mxu0 0.0
        %1774 = vmatpush1.msra.mxu0 0.0
        %1775 = vmatprep.subr.mxu0 0.0
        %1776 = vmatpush1.msra.mxu0 0.0
        %1777 = vmatprep.subr.mxu0 0.0
        %1778 = vmatpush1.msra.mxu0 0.0
        %1779 = vmatprep.subr.mxu0 0.0
        %1780 = vmatpush1.msra.mxu0 0.0
        %1781 = vmatprep.subr.mxu0 0.0
        %1782 = vmatpush1.msra.mxu0 0.0
        %1783 = vmatprep.mubr.f32.mxu0 0.0
        %v1784 = vand.u32 %v1713, 4294901760
        %v1785 = vsub.f32 %v1713, %v1784
        %v1786 = vand.u32 %v1785, 4294901760
        %v1787 = vsub.f32 %v1785, %v1786
        %v1788 = vand.u32 %v1787, 4294901760
        %1789 = vmatmul.mubr.f32.gmra.mrb[0].mxu0 %v1788
        %v1790 = vpop.f32.mrb[0].mxu0
        %v1791 = vadd.f32 %v1695, %v1790
        %v1792 = vpop.f32.mrb[0].mxu0
        %1793 = vdwg.mxu0
        %1794 = vmatprep.subr.mxu0 0.0
        %v1795 = vand.u32 %v1205, 4294901760
        %v1796 = vsub.f32 %v1205, %v1795
        %v1797 = vand.u32 %v1796, 4294901760
        %v1798 = vsub.f32 %v1796, %v1797
        %v1799 = vand.u32 %v1798, 4294901760
        %1800 = vmatpush1.msra.mxu0 %v1799
        %1801 = vmatprep.subr.mxu0 0.0
        %v1802 = vand.u32 %v1206, 4294901760
        %v1803 = vsub.f32 %v1206, %v1802
        %v1804 = vand.u32 %v1803, 4294901760
        %v1805 = vsub.f32 %v1803, %v1804
        %v1806 = vand.u32 %v1805, 4294901760
        %1807 = vmatpush1.msra.mxu0 %v1806
        %1808 = vmatprep.subr.mxu0 0.0
        %v1809 = vand.u32 %v1207, 4294901760
        %v1810 = vsub.f32 %v1207, %v1809
        %v1811 = vand.u32 %v1810, 4294901760
        %v1812 = vsub.f32 %v1810, %v1811
        %v1813 = vand.u32 %v1812, 4294901760
        %1814 = vmatpush1.msra.mxu0 %v1813
        %1815 = vmatprep.subr.mxu0 0.0
        %v1816 = vand.u32 %v1208, 4294901760
        %v1817 = vsub.f32 %v1208, %v1816
        %v1818 = vand.u32 %v1817, 4294901760
        %v1819 = vsub.f32 %v1817, %v1818
        %v1820 = vand.u32 %v1819, 4294901760
        %1821 = vmatpush1.msra.mxu0 %v1820
        %1822 = vmatprep.subr.mxu0 0.0
        %1823 = vmatpush1.msra.mxu0 0.0
        %1824 = vmatprep.subr.mxu0 0.0
        %1825 = vmatpush1.msra.mxu0 0.0
        %1826 = vmatprep.subr.mxu0 0.0
        %1827 = vmatpush1.msra.mxu0 0.0
        %1828 = vmatprep.subr.mxu0 0.0
        %1829 = vmatpush1.msra.mxu0 0.0
        %1830 = vmatprep.subr.mxu0 0.0
        %1831 = vmatpush1.msra.mxu0 0.0
        %1832 = vmatprep.subr.mxu0 0.0
        %1833 = vmatpush1.msra.mxu0 0.0
        %1834 = vmatprep.subr.mxu0 0.0
        %1835 = vmatpush1.msra.mxu0 0.0
        %1836 = vmatprep.subr.mxu0 0.0
        %1837 = vmatpush1.msra.mxu0 0.0
        %1838 = vmatprep.subr.mxu0 0.0
        %1839 = vmatpush1.msra.mxu0 0.0
        %1840 = vmatprep.subr.mxu0 0.0
        %1841 = vmatpush1.msra.mxu0 0.0
        %1842 = vmatprep.subr.mxu0 0.0
        %1843 = vmatpush1.msra.mxu0 0.0
        %1844 = vmatprep.subr.mxu0 0.0
        %1845 = vmatpush1.msra.mxu0 0.0
        %1846 = vmatprep.subr.mxu0 0.0
        %1847 = vmatpush1.msra.mxu0 0.0
        %1848 = vmatprep.subr.mxu0 0.0
        %1849 = vmatpush1.msra.mxu0 0.0
        %1850 = vmatprep.subr.mxu0 0.0
        %1851 = vmatpush1.msra.mxu0 0.0
        %1852 = vmatprep.subr.mxu0 0.0
        %1853 = vmatpush1.msra.mxu0 0.0
        %1854 = vmatprep.subr.mxu0 0.0
        %1855 = vmatpush1.msra.mxu0 0.0
        %1856 = vmatprep.subr.mxu0 0.0
        %1857 = vmatpush1.msra.mxu0 0.0
        %1858 = vmatprep.subr.mxu0 0.0
        %1859 = vmatpush1.msra.mxu0 0.0
        %1860 = vmatprep.subr.mxu0 0.0
        %1861 = vmatpush1.msra.mxu0 0.0
        %1862 = vmatprep.subr.mxu0 0.0
        %1863 = vmatpush1.msra.mxu0 0.0
        %1864 = vmatprep.subr.mxu0 0.0
        %1865 = vmatpush1.msra.mxu0 0.0
        %1866 = vmatprep.subr.mxu0 0.0
        %1867 = vmatpush1.msra.mxu0 0.0
        %1868 = vmatprep.subr.mxu0 0.0
        %1869 = vmatpush1.msra.mxu0 0.0
        %1870 = vmatprep.subr.mxu0 0.0
        %1871 = vmatpush1.msra.mxu0 0.0
        %1872 = vmatprep.subr.mxu0 0.0
        %1873 = vmatpush1.msra.mxu0 0.0
        %1874 = vmatprep.subr.mxu0 0.0
        %1875 = vmatpush1.msra.mxu0 0.0
        %1876 = vmatprep.subr.mxu0 0.0
        %1877 = vmatpush1.msra.mxu0 0.0
        %1878 = vmatprep.mubr.f32.mxu0 0.0
        %v1879 = vand.u32 %v1713, 4294901760
        %1880 = vmatmul.mubr.f32.gmra.mrb[0].mxu0 %v1879
        %v1881 = vpop.f32.mrb[0].mxu0
        %v1882 = vadd.f32 %v1791, %v1881
        %v1883 = vpop.f32.mrb[0].mxu0
        %1884 = vdwg.mxu0
        %1885 = vmatprep.subr.mxu0 0.0
        %v1886 = vand.u32 %v1205, 4294901760
        %v1887 = vsub.f32 %v1205, %v1886
        %1888 = vmatpush1.msra.mxu0 %v1887
        %1889 = vmatprep.subr.mxu0 0.0
        %v1890 = vand.u32 %v1206, 4294901760
        %v1891 = vsub.f32 %v1206, %v1890
        %1892 = vmatpush1.msra.mxu0 %v1891
        %1893 = vmatprep.subr.mxu0 0.0
        %v1894 = vand.u32 %v1207, 4294901760
        %v1895 = vsub.f32 %v1207, %v1894
        %1896 = vmatpush1.msra.mxu0 %v1895
        %1897 = vmatprep.subr.mxu0 0.0
        %v1898 = vand.u32 %v1208, 4294901760
        %v1899 = vsub.f32 %v1208, %v1898
        %1900 = vmatpush1.msra.mxu0 %v1899
        %1901 = vmatprep.subr.mxu0 0.0
        %1902 = vmatpush1.msra.mxu0 0.0
        %1903 = vmatprep.subr.mxu0 0.0
        %1904 = vmatpush1.msra.mxu0 0.0
        %1905 = vmatprep.subr.mxu0 0.0
        %1906 = vmatpush1.msra.mxu0 0.0
        %1907 = vmatprep.subr.mxu0 0.0
        %1908 = vmatpush1.msra.mxu0 0.0
        %1909 = vmatprep.subr.mxu0 0.0
        %1910 = vmatpush1.msra.mxu0 0.0
        %1911 = vmatprep.subr.mxu0 0.0
        %1912 = vmatpush1.msra.mxu0 0.0
        %1913 = vmatprep.subr.mxu0 0.0
        %1914 = vmatpush1.msra.mxu0 0.0
        %1915 = vmatprep.subr.mxu0 0.0
        %1916 = vmatpush1.msra.mxu0 0.0
        %1917 = vmatprep.subr.mxu0 0.0
        %1918 = vmatpush1.msra.mxu0 0.0
        %1919 = vmatprep.subr.mxu0 0.0
        %1920 = vmatpush1.msra.mxu0 0.0
        %1921 = vmatprep.subr.mxu0 0.0
        %1922 = vmatpush1.msra.mxu0 0.0
        %1923 = vmatprep.subr.mxu0 0.0
        %1924 = vmatpush1.msra.mxu0 0.0
        %1925 = vmatprep.subr.mxu0 0.0
        %1926 = vmatpush1.msra.mxu0 0.0
        %1927 = vmatprep.subr.mxu0 0.0
        %1928 = vmatpush1.msra.mxu0 0.0
        %1929 = vmatprep.subr.mxu0 0.0
        %1930 = vmatpush1.msra.mxu0 0.0
        %1931 = vmatprep.subr.mxu0 0.0
        %1932 = vmatpush1.msra.mxu0 0.0
        %1933 = vmatprep.subr.mxu0 0.0
        %1934 = vmatpush1.msra.mxu0 0.0
        %1935 = vmatprep.subr.mxu0 0.0
        %1936 = vmatpush1.msra.mxu0 0.0
        %1937 = vmatprep.subr.mxu0 0.0
        %1938 = vmatpush1.msra.mxu0 0.0
        %1939 = vmatprep.subr.mxu0 0.0
        %1940 = vmatpush1.msra.mxu0 0.0
        %1941 = vmatprep.subr.mxu0 0.0
        %1942 = vmatpush1.msra.mxu0 0.0
        %1943 = vmatprep.subr.mxu0 0.0
        %1944 = vmatpush1.msra.mxu0 0.0
        %1945 = vmatprep.subr.mxu0 0.0
        %1946 = vmatpush1.msra.mxu0 0.0
        %1947 = vmatprep.subr.mxu0 0.0
        %1948 = vmatpush1.msra.mxu0 0.0
        %1949 = vmatprep.subr.mxu0 0.0
        %1950 = vmatpush1.msra.mxu0 0.0
        %1951 = vmatprep.subr.mxu0 0.0
        %1952 = vmatpush1.msra.mxu0 0.0
        %1953 = vmatprep.subr.mxu0 0.0
        %1954 = vmatpush1.msra.mxu0 0.0
        %1955 = vmatprep.subr.mxu0 0.0
        %1956 = vmatpush1.msra.mxu0 0.0
        %1957 = vmatprep.mubr.f32.mxu0 0.0
        %v1958 = vand.u32 %v1713, 4294901760
        %v1959 = vsub.f32 %v1713, %v1958
        %1960 = vmatmul.mubr.f32.gmra.mrb[0].mxu0 %v1959
        %v1961 = vpop.f32.mrb[0].mxu0
        %v1962 = vadd.f32 %v1882, %v1961
        %v1963 = vpop.f32.mrb[0].mxu0
        %1964 = vdwg.mxu0
        %1965 = vmatprep.subr.mxu0 0.0
        %v1966 = vand.u32 %v1205, 4294901760
        %1967 = vmatpush1.msra.mxu0 %v1966
        %1968 = vmatprep.subr.mxu0 0.0
        %v1969 = vand.u32 %v1206, 4294901760
        %1970 = vmatpush1.msra.mxu0 %v1969
        %1971 = vmatprep.subr.mxu0 0.0
        %v1972 = vand.u32 %v1207, 4294901760
        %1973 = vmatpush1.msra.mxu0 %v1972
        %1974 = vmatprep.subr.mxu0 0.0
        %v1975 = vand.u32 %v1208, 4294901760
        %1976 = vmatpush1.msra.mxu0 %v1975
        %1977 = vmatprep.subr.mxu0 0.0
        %1978 = vmatpush1.msra.mxu0 0.0
        %1979 = vmatprep.subr.mxu0 0.0
        %1980 = vmatpush1.msra.mxu0 0.0
        %1981 = vmatprep.subr.mxu0 0.0
        %1982 = vmatpush1.msra.mxu0 0.0
        %1983 = vmatprep.subr.mxu0 0.0
        %1984 = vmatpush1.msra.mxu0 0.0
        %1985 = vmatprep.subr.mxu0 0.0
        %1986 = vmatpush1.msra.mxu0 0.0
        %1987 = vmatprep.subr.mxu0 0.0
        %1988 = vmatpush1.msra.mxu0 0.0
        %1989 = vmatprep.subr.mxu0 0.0
        %1990 = vmatpush1.msra.mxu0 0.0
        %1991 = vmatprep.subr.mxu0 0.0
        %1992 = vmatpush1.msra.mxu0 0.0
        %1993 = vmatprep.subr.mxu0 0.0
        %1994 = vmatpush1.msra.mxu0 0.0
        %1995 = vmatprep.subr.mxu0 0.0
        %1996 = vmatpush1.msra.mxu0 0.0
        %1997 = vmatprep.subr.mxu0 0.0
        %1998 = vmatpush1.msra.mxu0 0.0
        %1999 = vmatprep.subr.mxu0 0.0
        %2000 = vmatpush1.msra.mxu0 0.0
        %2001 = vmatprep.subr.mxu0 0.0
        %2002 = vmatpush1.msra.mxu0 0.0
        %2003 = vmatprep.subr.mxu0 0.0
        %2004 = vmatpush1.msra.mxu0 0.0
        %2005 = vmatprep.subr.mxu0 0.0
        %2006 = vmatpush1.msra.mxu0 0.0
        %2007 = vmatprep.subr.mxu0 0.0
        %2008 = vmatpush1.msra.mxu0 0.0
        %2009 = vmatprep.subr.mxu0 0.0
        %2010 = vmatpush1.msra.mxu0 0.0
        %2011 = vmatprep.subr.mxu0 0.0
        %2012 = vmatpush1.msra.mxu0 0.0
        %2013 = vmatprep.subr.mxu0 0.0
        %2014 = vmatpush1.msra.mxu0 0.0
        %2015 = vmatprep.subr.mxu0 0.0
        %2016 = vmatpush1.msra.mxu0 0.0
        %2017 = vmatprep.subr.mxu0 0.0
        %2018 = vmatpush1.msra.mxu0 0.0
        %2019 = vmatprep.subr.mxu0 0.0
        %2020 = vmatpush1.msra.mxu0 0.0
        %2021 = vmatprep.subr.mxu0 0.0
        %2022 = vmatpush1.msra.mxu0 0.0
        %2023 = vmatprep.subr.mxu0 0.0
        %2024 = vmatpush1.msra.mxu0 0.0
        %2025 = vmatprep.subr.mxu0 0.0
        %2026 = vmatpush1.msra.mxu0 0.0
        %2027 = vmatprep.subr.mxu0 0.0
        %2028 = vmatpush1.msra.mxu0 0.0
        %2029 = vmatprep.subr.mxu0 0.0
        %2030 = vmatpush1.msra.mxu0 0.0
        %2031 = vmatprep.subr.mxu0 0.0
        %2032 = vmatpush1.msra.mxu0 0.0
        %2033 = vmatprep.mubr.f32.mxu0 0.0
        %v2034 = vand.u32 %v1713, 4294901760
        %v2035 = vsub.f32 %v1713, %v2034
        %v2036 = vand.u32 %v2035, 4294901760
        %2037 = vmatmul.mubr.f32.gmra.mrb[0].mxu0 %v2036
        %v2038 = vpop.f32.mrb[0].mxu0
        %v2039 = vadd.f32 %v1962, %v2038
        %v2040 = vpop.f32.mrb[0].mxu0
        %2041 = vdwg.mxu0
        %2042 = vmatprep.subr.mxu0 0.0
        %v2043 = vand.u32 %v1205, 4294901760
        %v2044 = vsub.f32 %v1205, %v2043
        %v2045 = vand.u32 %v2044, 4294901760
        %2046 = vmatpush1.msra.mxu0 %v2045
        %2047 = vmatprep.subr.mxu0 0.0
        %v2048 = vand.u32 %v1206, 4294901760
        %v2049 = vsub.f32 %v1206, %v2048
        %v2050 = vand.u32 %v2049, 4294901760
        %2051 = vmatpush1.msra.mxu0 %v2050
        %2052 = vmatprep.subr.mxu0 0.0
        %v2053 = vand.u32 %v1207, 4294901760
        %v2054 = vsub.f32 %v1207, %v2053
        %v2055 = vand.u32 %v2054, 4294901760
        %2056 = vmatpush1.msra.mxu0 %v2055
        %2057 = vmatprep.subr.mxu0 0.0
        %v2058 = vand.u32 %v1208, 4294901760
        %v2059 = vsub.f32 %v1208, %v2058
        %v2060 = vand.u32 %v2059, 4294901760
        %2061 = vmatpush1.msra.mxu0 %v2060
        %2062 = vmatprep.subr.mxu0 0.0
        %2063 = vmatpush1.msra.mxu0 0.0
        %2064 = vmatprep.subr.mxu0 0.0
        %2065 = vmatpush1.msra.mxu0 0.0
        %2066 = vmatprep.subr.mxu0 0.0
        %2067 = vmatpush1.msra.mxu0 0.0
        %2068 = vmatprep.subr.mxu0 0.0
        %2069 = vmatpush1.msra.mxu0 0.0
        %2070 = vmatprep.subr.mxu0 0.0
        %2071 = vmatpush1.msra.mxu0 0.0
        %2072 = vmatprep.subr.mxu0 0.0
        %2073 = vmatpush1.msra.mxu0 0.0
        %2074 = vmatprep.subr.mxu0 0.0
        %2075 = vmatpush1.msra.mxu0 0.0
        %2076 = vmatprep.subr.mxu0 0.0
        %2077 = vmatpush1.msra.mxu0 0.0
        %2078 = vmatprep.subr.mxu0 0.0
        %2079 = vmatpush1.msra.mxu0 0.0
        %2080 = vmatprep.subr.mxu0 0.0
        %2081 = vmatpush1.msra.mxu0 0.0
        %2082 = vmatprep.subr.mxu0 0.0
        %2083 = vmatpush1.msra.mxu0 0.0
        %2084 = vmatprep.subr.mxu0 0.0
        %2085 = vmatpush1.msra.mxu0 0.0
        %2086 = vmatprep.subr.mxu0 0.0
        %2087 = vmatpush1.msra.mxu0 0.0
        %2088 = vmatprep.subr.mxu0 0.0
        %2089 = vmatpush1.msra.mxu0 0.0
        %2090 = vmatprep.subr.mxu0 0.0
        %2091 = vmatpush1.msra.mxu0 0.0
        %2092 = vmatprep.subr.mxu0 0.0
        %2093 = vmatpush1.msra.mxu0 0.0
        %2094 = vmatprep.subr.mxu0 0.0
        %2095 = vmatpush1.msra.mxu0 0.0
        %2096 = vmatprep.subr.mxu0 0.0
        %2097 = vmatpush1.msra.mxu0 0.0
        %2098 = vmatprep.subr.mxu0 0.0
        %2099 = vmatpush1.msra.mxu0 0.0
        %2100 = vmatprep.subr.mxu0 0.0
        %2101 = vmatpush1.msra.mxu0 0.0
        %2102 = vmatprep.subr.mxu0 0.0
        %2103 = vmatpush1.msra.mxu0 0.0
        %2104 = vmatprep.subr.mxu0 0.0
        %2105 = vmatpush1.msra.mxu0 0.0
        %2106 = vmatprep.subr.mxu0 0.0
        %2107 = vmatpush1.msra.mxu0 0.0
        %2108 = vmatprep.subr.mxu0 0.0
        %2109 = vmatpush1.msra.mxu0 0.0
        %2110 = vmatprep.subr.mxu0 0.0
        %2111 = vmatpush1.msra.mxu0 0.0
        %2112 = vmatprep.subr.mxu0 0.0
        %2113 = vmatpush1.msra.mxu0 0.0
        %2114 = vmatprep.subr.mxu0 0.0
        %2115 = vmatpush1.msra.mxu0 0.0
        %2116 = vmatprep.subr.mxu0 0.0
        %2117 = vmatpush1.msra.mxu0 0.0
        %2118 = vmatprep.mubr.f32.mxu0 0.0
        %v2119 = vand.u32 %v1713, 4294901760
        %2120 = vmatmul.mubr.f32.gmra.mrb[0].mxu0 %v2119
        %v2121 = vpop.f32.mrb[0].mxu0
        %v2122 = vadd.f32 %v2039, %v2121
        %v2123 = vpop.f32.mrb[0].mxu0
        %2124 = vdwg.mxu0
        %2125 = vmatprep.subr.mxu0 0.0
        %v2126 = vand.u32 %v1205, 4294901760
        %2127 = vmatpush1.msra.mxu0 %v2126
        %2128 = vmatprep.subr.mxu0 0.0
        %v2129 = vand.u32 %v1206, 4294901760
        %2130 = vmatpush1.msra.mxu0 %v2129
        %2131 = vmatprep.subr.mxu0 0.0
        %v2132 = vand.u32 %v1207, 4294901760
        %2133 = vmatpush1.msra.mxu0 %v2132
        %2134 = vmatprep.subr.mxu0 0.0
        %v2135 = vand.u32 %v1208, 4294901760
        %2136 = vmatpush1.msra.mxu0 %v2135
        %2137 = vmatprep.subr.mxu0 0.0
        %2138 = vmatpush1.msra.mxu0 0.0
        %2139 = vmatprep.subr.mxu0 0.0
        %2140 = vmatpush1.msra.mxu0 0.0
        %2141 = vmatprep.subr.mxu0 0.0
        %2142 = vmatpush1.msra.mxu0 0.0
        %2143 = vmatprep.subr.mxu0 0.0
        %2144 = vmatpush1.msra.mxu0 0.0
        %2145 = vmatprep.subr.mxu0 0.0
        %2146 = vmatpush1.msra.mxu0 0.0
        %2147 = vmatprep.subr.mxu0 0.0
        %2148 = vmatpush1.msra.mxu0 0.0
        %2149 = vmatprep.subr.mxu0 0.0
        %2150 = vmatpush1.msra.mxu0 0.0
        %2151 = vmatprep.subr.mxu0 0.0
        %2152 = vmatpush1.msra.mxu0 0.0
        %2153 = vmatprep.subr.mxu0 0.0
        %2154 = vmatpush1.msra.mxu0 0.0
        %2155 = vmatprep.subr.mxu0 0.0
        %2156 = vmatpush1.msra.mxu0 0.0
        %2157 = vmatprep.subr.mxu0 0.0
        %2158 = vmatpush1.msra.mxu0 0.0
        %2159 = vmatprep.subr.mxu0 0.0
        %2160 = vmatpush1.msra.mxu0 0.0
        %2161 = vmatprep.subr.mxu0 0.0
        %2162 = vmatpush1.msra.mxu0 0.0
        %2163 = vmatprep.subr.mxu0 0.0
        %2164 = vmatpush1.msra.mxu0 0.0
        %2165 = vmatprep.subr.mxu0 0.0
        %2166 = vmatpush1.msra.mxu0 0.0
        %2167 = vmatprep.subr.mxu0 0.0
        %2168 = vmatpush1.msra.mxu0 0.0
        %2169 = vmatprep.subr.mxu0 0.0
        %2170 = vmatpush1.msra.mxu0 0.0
        %2171 = vmatprep.subr.mxu0 0.0
        %2172 = vmatpush1.msra.mxu0 0.0
        %2173 = vmatprep.subr.mxu0 0.0
        %2174 = vmatpush1.msra.mxu0 0.0
        %2175 = vmatprep.subr.mxu0 0.0
        %2176 = vmatpush1.msra.mxu0 0.0
        %2177 = vmatprep.subr.mxu0 0.0
        %2178 = vmatpush1.msra.mxu0 0.0
        %2179 = vmatprep.subr.mxu0 0.0
        %2180 = vmatpush1.msra.mxu0 0.0
        %2181 = vmatprep.subr.mxu0 0.0
        %2182 = vmatpush1.msra.mxu0 0.0
        %2183 = vmatprep.subr.mxu0 0.0
        %2184 = vmatpush1.msra.mxu0 0.0
        %2185 = vmatprep.subr.mxu0 0.0
        %2186 = vmatpush1.msra.mxu0 0.0
        %2187 = vmatprep.subr.mxu0 0.0
        %2188 = vmatpush1.msra.mxu0 0.0
        %2189 = vmatprep.subr.mxu0 0.0
        %2190 = vmatpush1.msra.mxu0 0.0
        %2191 = vmatprep.subr.mxu0 0.0
        %2192 = vmatpush1.msra.mxu0 0.0
        %2193 = vmatprep.mubr.f32.mxu0 0.0
        %v2194 = vand.u32 %v1713, 4294901760
        %2195 = vmatmul.mubr.f32.gmra.mrb[0].mxu0 %v2194
        %v2196 = vpop.f32.mrb[0].mxu0
        %v2197 = vadd.f32 %v2122, %v2196
        %v2198 = vpop.f32.mrb[0].mxu0
        %2199 = vdwg.mxu0
        %v2200 = vtanh.pop %v2197
        %2201 = vst.msk [vmem:[%s373] sm:$0xff] %vm396, %v2200
        %2202 = vst.msk [vmem:[%s380] sm:$0xff] %vm1073, %v1084
        %s2203 = sand.u32 %s159, 1
        %s2204 = scalar_lea.sflag [#allocation4], %s2203
        %s2205 = sand.u32 %s159, 1
        %s2206 = smul.addr %s2205, 8
        %s2207 = scalar_lea.vmem [#allocation11], %s2206
        %s2208 = sand.u32 %s185, 1
        %s2209 = scalar_lea.sflag [#allocation13], %s2208
        %s2210 = sand.u32 %s185, 1
        %s2211 = smul.addr %s2210, 8
        %s2212 = scalar_lea.vmem [#allocation12], %s2211
        // Predicated region
        $region61: #{tpu_custom_call.1} parent=39 // pred_check
          %p2213 = pneg %p169
        $region62: #{tpu_custom_call.1} parent=39 // pred_check_branch
          %2215 = sbr.rel (%p2213) target = $region64
        $region63: #{tpu_custom_call.1} parent=39 // pred_region
          %s2217 = ssub.s32 128, 128
          %2218 = vsyncadd %s2204, %s2217
          %s2219 = smul.addr %s31, 128
          %s2220 = scalar_lea.hbm %s5, %s2219
          %s2222 = sshll.u32 %s2207, 4
          %s2223 = int_to_ptr.vmem [resolvable:$true] %s2222
          %2225 = dma.vmem_to_hbm [thread:$0]  %s2223, 128, %s2220, %s2204
        $region64: #{tpu_custom_call.1} parent=39 // pred_fallthru
          _
        // Predicated region
        $region65: #{tpu_custom_call.1} parent=39 // pred_check
          %p2226 = pneg %p195
        $region66: #{tpu_custom_call.1} parent=39 // pred_check_branch
          %2228 = sbr.rel (%p2226) target = $region68
        $region67: #{tpu_custom_call.1} parent=39 // pred_region
          %s2230 = ssub.s32 128, 128
          %2231 = vsyncadd %s2209, %s2230
          %s2232 = smul.addr %s31, 128
          %s2233 = scalar_lea.hbm %s6, %s2232
          %s2235 = sshll.u32 %s2212, 4
          %s2236 = int_to_ptr.vmem [resolvable:$true] %s2235
          %2238 = dma.vmem_to_hbm [thread:$0]  %s2236, 128, %s2233, %s2209
        $region68: #{tpu_custom_call.1} parent=39 // pred_fallthru
          _
      $region40: #{tpu_custom_call.1} parent=5 // pred_fallthru
        _
      %p2239 = scmp.le.s32.totalorder 2, %s26
      // Predicated region
      $region69: #{tpu_custom_call.1} parent=5 // pred_check
        %p2240 = pneg %p2239
      $region70: #{tpu_custom_call.1} parent=5 // pred_check_branch
        %2242 = sbr.rel (%p2240) target = $region72
      $region71: #{tpu_custom_call.1} parent=5 // pred_region
        %s2243 = ssub.s32 %s26, 2
        // Predicated region
        $region73: #{tpu_custom_call.1} parent=71 // pred_check
          %p2244 = pneg %p175
        $region74: #{tpu_custom_call.1} parent=71 // pred_check_branch
          %2246 = sbr.rel (%p2244) target = $region76
        $region75: #{tpu_custom_call.1} parent=71 // pred_region
          %s2247 = sand.u32 %s160, 1
          %s2248 = scalar_lea.sflag [#allocation4], %s2247
          %s2249 = sand.u32 %s160, 1
          %s2250 = smul.addr %s2249, 8
          %s2251 = scalar_lea.vmem [#allocation11], %s2250
          %2252 = dma.done %s2248, 128
        $region76: #{tpu_custom_call.1} parent=71 // pred_fallthru
          _
        // Predicated region
        $region77: #{tpu_custom_call.1} parent=71 // pred_check
          %p2253 = pneg %p201
        $region78: #{tpu_custom_call.1} parent=71 // pred_check_branch
          %2255 = sbr.rel (%p2253) target = $region80
        $region79: #{tpu_custom_call.1} parent=71 // pred_region
          %s2256 = sand.u32 %s186, 1
          %s2257 = scalar_lea.sflag [#allocation13], %s2256
          %s2258 = sand.u32 %s186, 1
          %s2259 = smul.addr %s2258, 8
          %s2260 = scalar_lea.vmem [#allocation12], %s2259
          %2261 = dma.done %s2257, 128
        $region80: #{tpu_custom_call.1} parent=71 // pred_fallthru
          _
      $region72: #{tpu_custom_call.1} parent=5 // pred_fallthru
        _
    $region6: #{tpu_custom_call.1} parent=1 // loop_footer
      %s30 = sadd.s32 1, %s26
    $region7: #{tpu_custom_call.1} parent=1 // loop_footer_branch
      %25 = sbr.rel target = $region3
    $region8: #{tpu_custom_call.1} parent=1 // loop_exit
      _
    %2262 = vsyncpa [#allocation3], 1
    %s2263 = scalar_lea.sflag [#allocation3], 1
    %2264 = vsyncpa %s2263, 1
    %2265 = vsyncpa [#allocation6], 1
    %s2266 = scalar_lea.sflag [#allocation6], 1
    %2267 = vsyncpa %s2266, 1
    %2268 = vsyncpa [#allocation9], 1
    %2269 = vsyncpa [#allocation4], 1
    %s2270 = scalar_lea.sflag [#allocation4], 1
    %2271 = vsyncpa %s2270, 1
    %2272 = vsyncpa [#allocation13], 1
    %s2273 = scalar_lea.sflag [#allocation13], 1
    %2274 = vsyncpa %s2273, 1

</llo_original>
